<compile_context>
chip_gen: v6e
topology: v6e:2x2x1
jax: 0.10.0
libtpu: 0.0.40
codegen_flags: <defaults>
</compile_context>

<pallas_src>
import functools

import jax
import jax.numpy as jnp
import numpy as np
from jax import lax
from jax.experimental import pallas as pl
from jax.experimental.pallas import tpu as pltpu


_INV_SQRT2 = float(1.0 / np.sqrt(2.0))


def _erf_poly(x):
    # Abramowitz & Stegun 7.1.26, |error| <= 1.5e-7 -- far below the test
    # tolerance, and built only from ops guaranteed to lower in Mosaic.
    a1, a2, a3, a4, a5 = (0.254829592, -0.284496736, 1.421413741,
                          -1.453152027, 1.061405429)
    p = 0.3275911
    sgn = jnp.where(x >= 0.0, 1.0, -1.0)
    ax = jnp.abs(x)
    t = 1.0 / (1.0 + p * ax)
    poly = ((((a5 * t + a4) * t + a3) * t + a2) * t + a1) * t
    return sgn * (1.0 - poly * jnp.exp(-(ax * ax)))


def _gelu_exact(x):
    # torch nn.GELU() default (approximate='none'): 0.5*x*(1+erf(x/sqrt(2))).
    return 0.5 * x * (1.0 + _erf_poly(x * _INV_SQRT2))


def mlp_kernel(x_ref, msk_ref, w1_ref, b1_ref, dww_ref, dwb_ref, w2_ref,
               b2_ref, o_ref, *, W):
    """One batch tile (Bt whole images folded into the lane axis) per step.

    x_ref  : (Cin, Lt)   msk_ref: (9, Lt)   (per-tap zero-pad validity masks)
    w1_ref : (Ch, Cin)   b1_ref : (Ch, 1)
    dww_ref: (Ch, 9)     dwb_ref: (Ch, 1)
    w2_ref : (Cout, Ch)  b2_ref : (Cout, 1)   o_ref: (Cout, Lt)
    """
    L = x_ref.shape[1]
    Ch = w1_ref.shape[0]

    x = x_ref[...]

    # ---- fc1: 1x1 conv == channel matmul, on the MXU --------------------
    # K = Cin is tiny, but the VPU slot is the saturated one (GELU + taps);
    # the MXU is idle except for fc2, so its padding waste is irrelevant.
    h = jnp.dot(w1_ref[...], x, preferred_element_type=jnp.float32)
    h = h + b1_ref[...]                                   # (Ch, Lt) + (Ch, 1)

    # ---- depthwise 3x3, stride 1, zero padding 1 -------------------------
    # 9 lane rolls (XLU slot) + masked FMAs.  Boundary masks come in as a
    # precomputed (9, Lt) float input: no in-kernel iota / div / compares.
    msk = msk_ref[...]
    dww = dww_ref[...]
    acc = jnp.zeros((Ch, L), jnp.float32)
    for dy in range(3):
        for dx in range(3):
            off = (dy - 1) * W + (dx - 1)
            k = dy * 3 + dx
            if off == 0:
                tap = h                                   # center: mask == 1
            else:
                tap = pltpu.roll(h, shift=(-off) % L, axis=1) * msk[k:k + 1, :]
            acc = acc + tap * dww[:, k:k + 1]
    acc = acc + dwb_ref[...]                              # (Ch, 1)

    # ---- GELU (exact-erf semantics); Dropout(p=0) is the identity --------
    a = _gelu_exact(acc)

    # ---- fc2: 1x1 conv == channel matmul on the MXU (K=Ch, N=Lt) ---------
    out = jnp.dot(w2_ref[...], a, preferred_element_type=jnp.float32)
    o_ref[...] = (out + b2_ref[...]).astype(o_ref.dtype)


def _tap_masks(bt, H, W):
    """(9, bt*H*W) float masks: 1 where the 3x3 tap's neighbour is in-image."""
    HW = H * W
    L = bt * HW
    p = np.arange(L)
    q = p % HW
    yy = q // W
    xx = q % W
    masks = np.ones((9, L), np.float32)
    for dy in range(3):
        for dx in range(3):
            m = np.ones(L, bool)
            if dy == 0:
                m &= yy >= 1
            elif dy == 2:
                m &= yy < H - 1
            if dx == 0:
                m &= xx >= 1
            elif dx == 2:
                m &= xx < W - 1
            masks[dy * 3 + dx] = m.astype(np.float32)
    return masks


def mlp_pallas(x_nchw, params):
    """x_nchw: (B, Cin, H, W) float32. Returns (B, Cout, H, W) float32."""
    w1, b1, dww, dwb, w2, b2 = params
    B, Cin, H, W = x_nchw.shape
    Ch = w1.shape[0]
    Cout = w2.shape[0]
    HW = H * W

    # Per-core VMEM capacity (v5e/v6e: 128 MiB, v7x: 64 MiB); keep headroom
    # for Mosaic internal scratch instead of claiming the whole budget.
    try:
        vmem_cap = int(pltpu.get_tpu_info().vmem_capacity_bytes)
    except Exception:  # pragma: no cover - conservative (v7x-safe) fallback
        vmem_cap = 64 * 1024 * 1024
    vmem_usable = int(0.75 * vmem_cap)

    w_bytes = 4 * (Ch * Cin + Ch + Ch * 9 + Ch + Cout * Ch + Cout)

    def step_bytes(bt):
        lt = bt * HW
        io = 4 * lt * (Cin + Cout) * 2        # double-buffered in/out blocks
        mask = 4 * 9 * lt * 2                 # resident tap masks
        interm = 4 * Ch * lt * 8              # h, taps, acc, gelu, fc2 temps
        return io + mask + 2 * w_bytes + interm

    # Batch tile: as many whole images per grid step as fit comfortably in
    # VMEM, while keeping >= 2 (>= 4 when B allows) parallel grid steps so a
    # v7x megacore can shard the grid across both TensorCores.
    target_steps = 2 if B < 8 else 4
    Bt = 1
    for bt in range(1, B + 1):
        if B % bt:
            continue
        if B >= 2 and B // bt < min(B, target_steps):
            continue
        if step_bytes(bt) > int(0.6 * vmem_cap):
            continue
        Bt = bt
    G = B // Bt
    Lt = Bt * HW
    L = B * HW

    # One wrapper transpose folds the batch into the lane axis: (Cin, B*HW).
    # Every in-kernel slab is lane-dense (multiple of 128 lanes) and each
    # step's output is one contiguous (Cout, Bt*HW) slab.
    x2 = jnp.transpose(x_nchw.reshape(B, Cin, HW), (1, 0, 2)).reshape(Cin, L)
    masks = jnp.asarray(_tap_masks(Bt, H, W))

    def full(a):
        return pl.BlockSpec(a.shape, lambda g: (0,) * a.ndim)

    vmem_limit = int(min(max(step_bytes(Bt) + (2 << 20), 8 << 20), vmem_usable))

    out2 = pl.pallas_call(
        functools.partial(mlp_kernel, W=W),
        out_shape=jax.ShapeDtypeStruct((Cout, L), jnp.float32),
        grid_spec=pltpu.PrefetchScalarGridSpec(
            num_scalar_prefetch=0,
            grid=(G,),
            in_specs=[
                pl.BlockSpec((Cin, Lt), lambda g: (0, g)),
                full(masks), full(w1), full(b1), full(dww), full(dwb),
                full(w2), full(b2),
            ],
            out_specs=pl.BlockSpec((Cout, Lt), lambda g: (0, g)),
        ),
        compiler_params=pltpu.CompilerParams(
            dimension_semantics=("parallel",),
            vmem_limit_bytes=vmem_limit),
    )(x2, masks, w1, b1, dww, dwb, w2, b2)

    return jnp.transpose(out2.reshape(Cout, B, HW),
                         (1, 0, 2)).reshape(B, Cout, H, W)


# ----------------------------- reference (pure JAX, NCHW like torch) ---------
def mlp_reference(x, fc1_w, fc1_b, dw_w, dw_b, fc2_w, fc2_b):
    prec = lax.Precision.HIGHEST
    dn = lax.conv_dimension_numbers(x.shape, fc1_w.shape, ("NCHW", "OIHW", "NCHW"))
    h = lax.conv_general_dilated(x, fc1_w, (1, 1), "VALID",
                                 dimension_numbers=dn, precision=prec)
    h = h + fc1_b[None, :, None, None]
    hidden = dw_w.shape[0]
    dn2 = lax.conv_dimension_numbers(h.shape, dw_w.shape, ("NCHW", "OIHW", "NCHW"))
    h = lax.conv_general_dilated(h, dw_w, (1, 1), ((1, 1), (1, 1)),
                                 dimension_numbers=dn2,
                                 feature_group_count=hidden, precision=prec)
    h = h + dw_b[None, :, None, None]
    h = 0.5 * h * (1.0 + lax.erf(h * _INV_SQRT2))
    dn3 = lax.conv_dimension_numbers(h.shape, fc2_w.shape, ("NCHW", "OIHW", "NCHW"))
    o = lax.conv_general_dilated(h, fc2_w, (1, 1), "VALID",
                                 dimension_numbers=dn3, precision=prec)
    return o + fc2_b[None, :, None, None]


if __name__ == "__main__":
    B, Cin, H, W = 2, 4, 16, 16
    hidden = 32
    Cout = Cin  # out_features defaults to in_features in the module

    key = jax.random.PRNGKey(0)
    k1, k2, k3, k4, k5, k6, k7 = jax.random.split(key, 7)

    x = jax.random.normal(k1, (B, Cin, H, W), jnp.float32)

    # Torch-shaped parameters (deterministic synthetic init).
    fc1_w = 0.1 * jax.random.normal(k2, (hidden, Cin, 1, 1), jnp.float32)
    fc1_b = 0.1 * jax.random.normal(k3, (hidden,), jnp.float32)
    dw_w = 0.1 * jax.random.normal(k4, (hidden, 1, 3, 3), jnp.float32)
    dw_b = 0.1 * jax.random.normal(k5, (hidden,), jnp.float32)
    fc2_w = 0.1 * jax.random.normal(k6, (Cout, hidden, 1, 1), jnp.float32)
    fc2_b = 0.1 * jax.random.normal(k7, (Cout,), jnp.float32)

    # Kernel-friendly (channels-first) parameter layouts.
    w1 = fc1_w[:, :, 0, 0]                       # (hidden, Cin)
    b1 = fc1_b.reshape(hidden, 1)                # (hidden, 1)
    dww = dw_w[:, 0, :, :].reshape(hidden, 9)    # (hidden, 9), k = dy*3+dx
    dwb = dw_b.reshape(hidden, 1)                # (hidden, 1)
    w2 = fc2_w[:, :, 0, 0]                       # (Cout, hidden)
    b2 = fc2_b.reshape(Cout, 1)                  # (Cout, 1)

    params = (w1, b1, dww, dwb, w2, b2)

    out = jax.block_until_ready(jax.jit(mlp_pallas)(x, params))

    ref = mlp_reference(x, fc1_w, fc1_b, dw_w, dw_b, fc2_w, fc2_b)
    np.testing.assert_allclose(np.asarray(out), np.asarray(ref),
                               rtol=1e-4, atol=1e-4)
    print("KERNEL_OK")
</pallas_src>

<mosaic_0001>
module attributes {stable_mosaic.version = 11 : i64} {
  func.func @mlp_kernel(%arg0: i32, %arg1: memref<4x256xf32, #tpu.memory_space<vmem>>, %arg2: memref<9x256xf32, #tpu.memory_space<vmem>>, %arg3: memref<32x4xf32, #tpu.memory_space<vmem>>, %arg4: memref<32x1xf32, #tpu.memory_space<vmem>>, %arg5: memref<32x9xf32, #tpu.memory_space<vmem>>, %arg6: memref<32x1xf32, #tpu.memory_space<vmem>>, %arg7: memref<4x32xf32, #tpu.memory_space<vmem>>, %arg8: memref<4x1xf32, #tpu.memory_space<vmem>>, %arg9: memref<4x256xf32, #tpu.memory_space<vmem>>) attributes {dimension_semantics = [#tpu.dimension_semantics<parallel>], iteration_bounds = array<i64: 2>, scalar_prefetch = 0 : i64, scratch_operands = 0 : i64, tpu.core_type = #tpu.core_type<tc>, window_params = [{transform_indices = @transform_0, window_bounds = array<i64: 4, 256>}, {pipeline_mode = #tpu.pipeline_mode<synchronous>, transform_indices = @transform_1, window_bounds = array<i64: 9, 256>}, {pipeline_mode = #tpu.pipeline_mode<synchronous>, transform_indices = @transform_2, window_bounds = array<i64: 32, 4>}, {pipeline_mode = #tpu.pipeline_mode<synchronous>, transform_indices = @transform_3, window_bounds = array<i64: 32, 1>}, {pipeline_mode = #tpu.pipeline_mode<synchronous>, transform_indices = @transform_4, window_bounds = array<i64: 32, 9>}, {pipeline_mode = #tpu.pipeline_mode<synchronous>, transform_indices = @transform_5, window_bounds = array<i64: 32, 1>}, {pipeline_mode = #tpu.pipeline_mode<synchronous>, transform_indices = @transform_6, window_bounds = array<i64: 4, 32>}, {pipeline_mode = #tpu.pipeline_mode<synchronous>, transform_indices = @transform_7, window_bounds = array<i64: 4, 1>}, {transform_indices = @transform_8, window_bounds = array<i64: 4, 256>}]} {
    %c0 = arith.constant 0 : index
    %c0_0 = arith.constant 0 : index
    %0 = vector.load %arg1[%c0, %c0_0] : memref<4x256xf32, #tpu.memory_space<vmem>>, vector<4x256xf32>
    %c0_1 = arith.constant 0 : index
    %c0_2 = arith.constant 0 : index
    %1 = vector.load %arg3[%c0_1, %c0_2] : memref<32x4xf32, #tpu.memory_space<vmem>>, vector<32x4xf32>
    %cst = arith.constant dense<0.000000e+00> : vector<32x256xf32>
    %2 = tpu.matmul %1, %0, %cst {dimension_numbers = #tpu.dot_dimension_numbers<[1], [0], [0], [1], [0, 0, 1, 1], [], []>} : vector<32x4xf32>, vector<4x256xf32>, vector<32x256xf32> -> vector<32x256xf32>
    %c0_3 = arith.constant 0 : index
    %c0_4 = arith.constant 0 : index
    %3 = vector.load %arg4[%c0_3, %c0_4] : memref<32x1xf32, #tpu.memory_space<vmem>>, vector<32x1xf32>
    %4 = vector.broadcast %3 : vector<32x1xf32> to vector<32x256xf32>
    %5 = arith.addf %2, %4 : vector<32x256xf32>
    %c0_5 = arith.constant 0 : index
    %c0_6 = arith.constant 0 : index
    %6 = vector.load %arg2[%c0_5, %c0_6] : memref<9x256xf32, #tpu.memory_space<vmem>>, vector<9x256xf32>
    %c0_7 = arith.constant 0 : index
    %c0_8 = arith.constant 0 : index
    %7 = vector.load %arg5[%c0_7, %c0_8] : memref<32x9xf32, #tpu.memory_space<vmem>>, vector<32x9xf32>
    %cst_9 = arith.constant 0.000000e+00 : f32
    %8 = vector.broadcast %cst_9 : f32 to vector<32x256xf32>
    %c17_i32 = arith.constant 17 : i32
    %9 = tpu.dynamic_rotate %5 by %c17_i32 dim 1 : vector<32x256xf32>, i32 -> vector<32x256xf32>
    %10 = vector.extract_strided_slice %6 {offsets = [0, 0], sizes = [1, 256], strides = [1, 1]} : vector<9x256xf32> to vector<1x256xf32>
    %11 = vector.broadcast %10 : vector<1x256xf32> to vector<32x256xf32>
    %12 = arith.mulf %9, %11 : vector<32x256xf32>
    %13 = vector.extract_strided_slice %7 {offsets = [0, 0], sizes = [32, 1], strides = [1, 1]} : vector<32x9xf32> to vector<32x1xf32>
    %14 = vector.broadcast %13 : vector<32x1xf32> to vector<32x256xf32>
    %15 = arith.mulf %12, %14 : vector<32x256xf32>
    %16 = arith.addf %8, %15 : vector<32x256xf32>
    %c16_i32 = arith.constant 16 : i32
    %17 = tpu.dynamic_rotate %5 by %c16_i32 dim 1 : vector<32x256xf32>, i32 -> vector<32x256xf32>
    %18 = vector.extract_strided_slice %6 {offsets = [1, 0], sizes = [1, 256], strides = [1, 1]} : vector<9x256xf32> to vector<1x256xf32>
    %19 = vector.broadcast %18 : vector<1x256xf32> to vector<32x256xf32>
    %20 = arith.mulf %17, %19 : vector<32x256xf32>
    %21 = vector.extract_strided_slice %7 {offsets = [0, 1], sizes = [32, 1], strides = [1, 1]} : vector<32x9xf32> to vector<32x1xf32>
    %22 = vector.broadcast %21 : vector<32x1xf32> to vector<32x256xf32>
    %23 = arith.mulf %20, %22 : vector<32x256xf32>
    %24 = arith.addf %16, %23 : vector<32x256xf32>
    %c15_i32 = arith.constant 15 : i32
    %25 = tpu.dynamic_rotate %5 by %c15_i32 dim 1 : vector<32x256xf32>, i32 -> vector<32x256xf32>
    %26 = vector.extract_strided_slice %6 {offsets = [2, 0], sizes = [1, 256], strides = [1, 1]} : vector<9x256xf32> to vector<1x256xf32>
    %27 = vector.broadcast %26 : vector<1x256xf32> to vector<32x256xf32>
    %28 = arith.mulf %25, %27 : vector<32x256xf32>
    %29 = vector.extract_strided_slice %7 {offsets = [0, 2], sizes = [32, 1], strides = [1, 1]} : vector<32x9xf32> to vector<32x1xf32>
    %30 = vector.broadcast %29 : vector<32x1xf32> to vector<32x256xf32>
    %31 = arith.mulf %28, %30 : vector<32x256xf32>
    %32 = arith.addf %24, %31 : vector<32x256xf32>
    %c1_i32 = arith.constant 1 : i32
    %33 = tpu.dynamic_rotate %5 by %c1_i32 dim 1 : vector<32x256xf32>, i32 -> vector<32x256xf32>
    %34 = vector.extract_strided_slice %6 {offsets = [3, 0], sizes = [1, 256], strides = [1, 1]} : vector<9x256xf32> to vector<1x256xf32>
    %35 = vector.broadcast %34 : vector<1x256xf32> to vector<32x256xf32>
    %36 = arith.mulf %33, %35 : vector<32x256xf32>
    %37 = vector.extract_strided_slice %7 {offsets = [0, 3], sizes = [32, 1], strides = [1, 1]} : vector<32x9xf32> to vector<32x1xf32>
    %38 = vector.broadcast %37 : vector<32x1xf32> to vector<32x256xf32>
    %39 = arith.mulf %36, %38 : vector<32x256xf32>
    %40 = arith.addf %32, %39 : vector<32x256xf32>
    %41 = vector.extract_strided_slice %7 {offsets = [0, 4], sizes = [32, 1], strides = [1, 1]} : vector<32x9xf32> to vector<32x1xf32>
    %42 = vector.broadcast %41 : vector<32x1xf32> to vector<32x256xf32>
    %43 = arith.mulf %5, %42 : vector<32x256xf32>
    %44 = arith.addf %40, %43 : vector<32x256xf32>
    %c255_i32 = arith.constant 255 : i32
    %45 = tpu.dynamic_rotate %5 by %c255_i32 dim 1 : vector<32x256xf32>, i32 -> vector<32x256xf32>
    %46 = vector.extract_strided_slice %6 {offsets = [5, 0], sizes = [1, 256], strides = [1, 1]} : vector<9x256xf32> to vector<1x256xf32>
    %47 = vector.broadcast %46 : vector<1x256xf32> to vector<32x256xf32>
    %48 = arith.mulf %45, %47 : vector<32x256xf32>
    %49 = vector.extract_strided_slice %7 {offsets = [0, 5], sizes = [32, 1], strides = [1, 1]} : vector<32x9xf32> to vector<32x1xf32>
    %50 = vector.broadcast %49 : vector<32x1xf32> to vector<32x256xf32>
    %51 = arith.mulf %48, %50 : vector<32x256xf32>
    %52 = arith.addf %44, %51 : vector<32x256xf32>
    %c241_i32 = arith.constant 241 : i32
    %53 = tpu.dynamic_rotate %5 by %c241_i32 dim 1 : vector<32x256xf32>, i32 -> vector<32x256xf32>
    %54 = vector.extract_strided_slice %6 {offsets = [6, 0], sizes = [1, 256], strides = [1, 1]} : vector<9x256xf32> to vector<1x256xf32>
    %55 = vector.broadcast %54 : vector<1x256xf32> to vector<32x256xf32>
    %56 = arith.mulf %53, %55 : vector<32x256xf32>
    %57 = vector.extract_strided_slice %7 {offsets = [0, 6], sizes = [32, 1], strides = [1, 1]} : vector<32x9xf32> to vector<32x1xf32>
    %58 = vector.broadcast %57 : vector<32x1xf32> to vector<32x256xf32>
    %59 = arith.mulf %56, %58 : vector<32x256xf32>
    %60 = arith.addf %52, %59 : vector<32x256xf32>
    %c240_i32 = arith.constant 240 : i32
    %61 = tpu.dynamic_rotate %5 by %c240_i32 dim 1 : vector<32x256xf32>, i32 -> vector<32x256xf32>
    %62 = vector.extract_strided_slice %6 {offsets = [7, 0], sizes = [1, 256], strides = [1, 1]} : vector<9x256xf32> to vector<1x256xf32>
    %63 = vector.broadcast %62 : vector<1x256xf32> to vector<32x256xf32>
    %64 = arith.mulf %61, %63 : vector<32x256xf32>
    %65 = vector.extract_strided_slice %7 {offsets = [0, 7], sizes = [32, 1], strides = [1, 1]} : vector<32x9xf32> to vector<32x1xf32>
    %66 = vector.broadcast %65 : vector<32x1xf32> to vector<32x256xf32>
    %67 = arith.mulf %64, %66 : vector<32x256xf32>
    %68 = arith.addf %60, %67 : vector<32x256xf32>
    %c239_i32 = arith.constant 239 : i32
    %69 = tpu.dynamic_rotate %5 by %c239_i32 dim 1 : vector<32x256xf32>, i32 -> vector<32x256xf32>
    %70 = vector.extract_strided_slice %6 {offsets = [8, 0], sizes = [1, 256], strides = [1, 1]} : vector<9x256xf32> to vector<1x256xf32>
    %71 = vector.broadcast %70 : vector<1x256xf32> to vector<32x256xf32>
    %72 = arith.mulf %69, %71 : vector<32x256xf32>
    %73 = vector.extract_strided_slice %7 {offsets = [0, 8], sizes = [32, 1], strides = [1, 1]} : vector<32x9xf32> to vector<32x1xf32>
    %74 = vector.broadcast %73 : vector<32x1xf32> to vector<32x256xf32>
    %75 = arith.mulf %72, %74 : vector<32x256xf32>
    %76 = arith.addf %68, %75 : vector<32x256xf32>
    %c0_10 = arith.constant 0 : index
    %c0_11 = arith.constant 0 : index
    %77 = vector.load %arg6[%c0_10, %c0_11] : memref<32x1xf32, #tpu.memory_space<vmem>>, vector<32x1xf32>
    %78 = vector.broadcast %77 : vector<32x1xf32> to vector<32x256xf32>
    %79 = arith.addf %76, %78 : vector<32x256xf32>
    %cst_12 = arith.constant 5.000000e-01 : f32
    %80 = vector.broadcast %cst_12 : f32 to vector<32x256xf32>
    %81 = arith.mulf %80, %79 : vector<32x256xf32>
    %cst_13 = arith.constant 0.707106769 : f32
    %82 = vector.broadcast %cst_13 : f32 to vector<32x256xf32>
    %83 = arith.mulf %79, %82 : vector<32x256xf32>
    %cst_14 = arith.constant 0.000000e+00 : f32
    %84 = vector.broadcast %cst_14 : f32 to vector<32x256xf32>
    %85 = arith.cmpf oge, %83, %84 : vector<32x256xf32>
    %cst_15 = arith.constant 1.000000e+00 : f32
    %cst_16 = arith.constant -1.000000e+00 : f32
    %86 = vector.broadcast %cst_15 : f32 to vector<32x256xf32>
    %87 = vector.broadcast %cst_16 : f32 to vector<32x256xf32>
    %88 = arith.select %85, %86, %87 : vector<32x256xi1>, vector<32x256xf32>
    %89 = math.absf %83 : vector<32x256xf32>
    %cst_17 = arith.constant 0.327591091 : f32
    %90 = vector.broadcast %cst_17 : f32 to vector<32x256xf32>
    %91 = arith.mulf %90, %89 : vector<32x256xf32>
    %cst_18 = arith.constant 1.000000e+00 : f32
    %92 = vector.broadcast %cst_18 : f32 to vector<32x256xf32>
    %93 = arith.addf %92, %91 : vector<32x256xf32>
    %cst_19 = arith.constant 1.000000e+00 : f32
    %94 = vector.broadcast %cst_19 : f32 to vector<32x256xf32>
    %95 = arith.divf %94, %93 : vector<32x256xf32>
    %cst_20 = arith.constant 1.06140542 : f32
    %96 = vector.broadcast %cst_20 : f32 to vector<32x256xf32>
    %97 = arith.mulf %96, %95 : vector<32x256xf32>
    %cst_21 = arith.constant -1.45315206 : f32
    %98 = vector.broadcast %cst_21 : f32 to vector<32x256xf32>
    %99 = arith.addf %97, %98 : vector<32x256xf32>
    %100 = arith.mulf %99, %95 : vector<32x256xf32>
    %cst_22 = arith.constant 1.42141378 : f32
    %101 = vector.broadcast %cst_22 : f32 to vector<32x256xf32>
    %102 = arith.addf %100, %101 : vector<32x256xf32>
    %103 = arith.mulf %102, %95 : vector<32x256xf32>
    %cst_23 = arith.constant -0.284496725 : f32
    %104 = vector.broadcast %cst_23 : f32 to vector<32x256xf32>
    %105 = arith.addf %103, %104 : vector<32x256xf32>
    %106 = arith.mulf %105, %95 : vector<32x256xf32>
    %cst_24 = arith.constant 0.254829586 : f32
    %107 = vector.broadcast %cst_24 : f32 to vector<32x256xf32>
    %108 = arith.addf %106, %107 : vector<32x256xf32>
    %109 = arith.mulf %108, %95 : vector<32x256xf32>
    %110 = arith.mulf %89, %89 : vector<32x256xf32>
    %cst_25 = arith.constant 0.000000e+00 : f32
    %111 = vector.broadcast %cst_25 : f32 to vector<32x256xf32>
    %112 = arith.subf %111, %110 : vector<32x256xf32>
    %113 = math.exp %112 : vector<32x256xf32>
    %114 = arith.mulf %109, %113 : vector<32x256xf32>
    %cst_26 = arith.constant 1.000000e+00 : f32
    %115 = vector.broadcast %cst_26 : f32 to vector<32x256xf32>
    %116 = arith.subf %115, %114 : vector<32x256xf32>
    %117 = arith.mulf %88, %116 : vector<32x256xf32>
    %cst_27 = arith.constant 1.000000e+00 : f32
    %118 = vector.broadcast %cst_27 : f32 to vector<32x256xf32>
    %119 = arith.addf %118, %117 : vector<32x256xf32>
    %120 = arith.mulf %81, %119 : vector<32x256xf32>
    %c0_28 = arith.constant 0 : index
    %c0_29 = arith.constant 0 : index
    %121 = vector.load %arg7[%c0_28, %c0_29] : memref<4x32xf32, #tpu.memory_space<vmem>>, vector<4x32xf32>
    %cst_30 = arith.constant dense<0.000000e+00> : vector<4x256xf32>
    %122 = tpu.matmul %121, %120, %cst_30 {dimension_numbers = #tpu.dot_dimension_numbers<[1], [0], [0], [1], [0, 0, 1, 1], [], []>} : vector<4x32xf32>, vector<32x256xf32>, vector<4x256xf32> -> vector<4x256xf32>
    %c0_31 = arith.constant 0 : index
    %c0_32 = arith.constant 0 : index
    %123 = vector.load %arg8[%c0_31, %c0_32] : memref<4x1xf32, #tpu.memory_space<vmem>>, vector<4x1xf32>
    %124 = vector.broadcast %123 : vector<4x1xf32> to vector<4x256xf32>
    %125 = arith.addf %122, %124 : vector<4x256xf32>
    %c0_33 = arith.constant 0 : index
    %c0_34 = arith.constant 0 : index
    %126 = vector.load %arg9[%c0_33, %c0_34] : memref<4x256xf32, #tpu.memory_space<vmem>>, vector<4x256xf32>
    tpu.vector_store %arg9[%c0_33, %c0_34], %125 {strides = array<i32>} : memref<4x256xf32, #tpu.memory_space<vmem>>, vector<4x256xf32>,
    return
  }
  func.func @transform_0(%arg0: i32) -> (i32, i32) {
    %c0_i32 = arith.constant 0 : i32
    %c0_i32_0 = arith.constant 0 : i32
    return %c0_i32, %arg0 : i32, i32
  }
  func.func @transform_1(%arg0: i32) -> (i32, i32) {
    %c0_i32 = arith.constant 0 : i32
    %c0_i32_0 = arith.constant 0 : i32
    %c0_i32_1 = arith.constant 0 : i32
    return %c0_i32, %c0_i32_0 : i32, i32
  }
  func.func @transform_2(%arg0: i32) -> (i32, i32) {
    %c0_i32 = arith.constant 0 : i32
    %c0_i32_0 = arith.constant 0 : i32
    %c0_i32_1 = arith.constant 0 : i32
    return %c0_i32, %c0_i32_0 : i32, i32
  }
  func.func @transform_3(%arg0: i32) -> (i32, i32) {
    %c0_i32 = arith.constant 0 : i32
    %c0_i32_0 = arith.constant 0 : i32
    %c0_i32_1 = arith.constant 0 : i32
    return %c0_i32, %c0_i32_0 : i32, i32
  }
  func.func @transform_4(%arg0: i32) -> (i32, i32) {
    %c0_i32 = arith.constant 0 : i32
    %c0_i32_0 = arith.constant 0 : i32
    %c0_i32_1 = arith.constant 0 : i32
    return %c0_i32, %c0_i32_0 : i32, i32
  }
  func.func @transform_5(%arg0: i32) -> (i32, i32) {
    %c0_i32 = arith.constant 0 : i32
    %c0_i32_0 = arith.constant 0 : i32
    %c0_i32_1 = arith.constant 0 : i32
    return %c0_i32, %c0_i32_0 : i32, i32
  }
  func.func @transform_6(%arg0: i32) -> (i32, i32) {
    %c0_i32 = arith.constant 0 : i32
    %c0_i32_0 = arith.constant 0 : i32
    %c0_i32_1 = arith.constant 0 : i32
    return %c0_i32, %c0_i32_0 : i32, i32
  }
  func.func @transform_7(%arg0: i32) -> (i32, i32) {
    %c0_i32 = arith.constant 0 : i32
    %c0_i32_0 = arith.constant 0 : i32
    %c0_i32_1 = arith.constant 0 : i32
    return %c0_i32, %c0_i32_0 : i32, i32
  }
  func.func @transform_8(%arg0: i32) -> (i32, i32) {
    %c0_i32 = arith.constant 0 : i32
    %c0_i32_0 = arith.constant 0 : i32
    return %c0_i32, %arg0 : i32, i32
  }
}

</mosaic_0001>

<llo_original>
// kernel: mlp_pallas.1
$region0: #{mlp_pallas.1}
  #allocation0 [shape = 'u32[]', space=smem, size = 0x4, offset = 0x4, fixed_abs, tag = 'smem constant byte address 0x4 - core index']
  #allocation1 [shape = 'u32[144,128]{1,0:T(1,128)}', space=vmem, size = 0x12000, scoped, tag = 'internal scratch']
  %s0 = inlined_call_operand.vmem [shape: f32[4,512], index: 0, kind: input, shape index: {}]
  %s1 = inlined_call_operand.vmem [shape: f32[9,256], index: 1, kind: input, shape index: {}]
  %s2 = inlined_call_operand.vmem [shape: f32[32,4], index: 2, kind: input, shape index: {}]
  %s3 = inlined_call_operand.vmem [shape: f32[32,1], index: 3, kind: input, shape index: {}]
  %s4 = inlined_call_operand.vmem [shape: f32[32,9], index: 4, kind: input, shape index: {}]
  %s5 = inlined_call_operand.vmem [shape: f32[32,1], index: 5, kind: input, shape index: {}]
  %s6 = inlined_call_operand.vmem [shape: f32[4,32], index: 6, kind: input, shape index: {}]
  %s7 = inlined_call_operand.vmem [shape: f32[4,1], index: 7, kind: input, shape index: {}]
  %s8 = inlined_call_operand.vmem [shape: f32[4,512], index: 8, kind: output, shape index: {}]
  %s9 = sld [smem:[#allocation0]]
  $region65: #{mlp_pallas.1} parent=0
    _
  %s11 = ssub.s32 1, %s9
  %s12 = scalar_select 0, %s11, %s9
  loop: start=0, step=1, limit=4
  $region2: #{mlp_pallas.1} parent=0 // loop_pre_header
    _
  $region3: #{mlp_pallas.1} parent=0 // loop_header
    %s14 = sphi 0, %s18
    %p15 = scmp.ge.s32.totalorder %s14, 4
    %s24 = sphi 0, %s26
    %s27 = sphi 0, %s24
    %s28 = sphi 0, %s27
    %s44 = sphi 0, %s28
    %s48 = sphi 0, %s48
    %s50 = sphi 0, %s48
    %s51 = sphi 0, %s50
    %s65 = sphi 0, %s51
    %s69 = sphi 0, %s69
    %s71 = sphi 0, %s69
    %s72 = sphi 0, %s71
    %s86 = sphi 0, %s72
    %s90 = sphi 0, %s90
    %s92 = sphi 0, %s90
    %s93 = sphi 0, %s92
    %s107 = sphi 0, %s93
    %s111 = sphi 0, %s111
    %s113 = sphi 0, %s111
    %s114 = sphi 0, %s113
    %s128 = sphi 0, %s114
    %s132 = sphi 0, %s132
    %s134 = sphi 0, %s132
    %s135 = sphi 0, %s134
    %s149 = sphi 0, %s135
    %s153 = sphi 0, %s153
    %s155 = sphi 0, %s153
    %s156 = sphi 0, %s155
    %s170 = sphi 0, %s156
    %s174 = sphi 0, %s174
    %s176 = sphi 0, %s174
    %s177 = sphi 0, %s176
    %s191 = sphi 0, %s177
    %s197 = sphi 0, %s199
    %s200 = sphi 0, %s197
    %s201 = sphi 0, %s200
    %s217 = sphi 0, %s201
  $region4: #{mlp_pallas.1} parent=0 // loop_header_branch
    %17 = sbr.rel (%p15) target = $region8
  $region5: #{mlp_pallas.1} parent=0 // loop_body
    %s19 = ssub.s32 %s14, 1
    %s20 = ssub.s32 %s14, 2
    %s21 = sadd.s32 %s14, 1
    %s22 = ssub.s32 %s14, %s21
    %p23 = scmp.eq.s32.totalorder %s22, 0
    %s25 = sadd.s32 %s24, 1
    %s26 = scalar_select %p23, %s24, %s25
    %p29 = pneg %p23
    %p30 = scmp.eq.s32.totalorder %s14, 1
    %p31 = por %p29, %p30
    %p32 = scmp.ne.s32.totalorder %s24, %s27
    %p33 = scmp.eq.s32.totalorder %s14, 0
    %p34 = por %p32, %p33
    %p35 = scmp.ne.s32.totalorder %s24, %s27
    %p36 = scmp.eq.s32.totalorder %s19, 1
    %p37 = por %p35, %p36
    %p38 = scmp.ne.s32.totalorder %s27, %s28
    %p39 = scmp.eq.s32.totalorder %s19, 0
    %p40 = por %p38, %p39
    %p41 = scmp.ne.s32.totalorder %s27, %s28
    %p42 = scmp.eq.s32.totalorder %s20, 1
    %p43 = por %p41, %p42
    %p45 = scmp.ne.s32.totalorder %s28, %s44
    %p46 = scmp.eq.s32.totalorder %s20, 0
    %p47 = por %p45, %p46
    %s49 = sadd.s32 %s48, 1
    %p52 = scmp.eq.s32.totalorder %s14, 1
    %p53 = scmp.ne.s32.totalorder %s48, %s50
    %p54 = scmp.eq.s32.totalorder %s14, 0
    %p55 = por %p53, %p54
    %p56 = scmp.ne.s32.totalorder %s48, %s50
    %p57 = scmp.eq.s32.totalorder %s19, 1
    %p58 = por %p56, %p57
    %p59 = scmp.ne.s32.totalorder %s50, %s51
    %p60 = scmp.eq.s32.totalorder %s19, 0
    %p61 = por %p59, %p60
    %p62 = scmp.ne.s32.totalorder %s50, %s51
    %p63 = scmp.eq.s32.totalorder %s20, 1
    %p64 = por %p62, %p63
    %p66 = scmp.ne.s32.totalorder %s51, %s65
    %p67 = scmp.eq.s32.totalorder %s20, 0
    %p68 = por %p66, %p67
    %s70 = sadd.s32 %s69, 1
    %p73 = scmp.eq.s32.totalorder %s14, 1
    %p74 = scmp.ne.s32.totalorder %s69, %s71
    %p75 = scmp.eq.s32.totalorder %s14, 0
    %p76 = por %p74, %p75
    %p77 = scmp.ne.s32.totalorder %s69, %s71
    %p78 = scmp.eq.s32.totalorder %s19, 1
    %p79 = por %p77, %p78
    %p80 = scmp.ne.s32.totalorder %s71, %s72
    %p81 = scmp.eq.s32.totalorder %s19, 0
    %p82 = por %p80, %p81
    %p83 = scmp.ne.s32.totalorder %s71, %s72
    %p84 = scmp.eq.s32.totalorder %s20, 1
    %p85 = por %p83, %p84
    %p87 = scmp.ne.s32.totalorder %s72, %s86
    %p88 = scmp.eq.s32.totalorder %s20, 0
    %p89 = por %p87, %p88
    %s91 = sadd.s32 %s90, 1
    %p94 = scmp.eq.s32.totalorder %s14, 1
    %p95 = scmp.ne.s32.totalorder %s90, %s92
    %p96 = scmp.eq.s32.totalorder %s14, 0
    %p97 = por %p95, %p96
    %p98 = scmp.ne.s32.totalorder %s90, %s92
    %p99 = scmp.eq.s32.totalorder %s19, 1
    %p100 = por %p98, %p99
    %p101 = scmp.ne.s32.totalorder %s92, %s93
    %p102 = scmp.eq.s32.totalorder %s19, 0
    %p103 = por %p101, %p102
    %p104 = scmp.ne.s32.totalorder %s92, %s93
    %p105 = scmp.eq.s32.totalorder %s20, 1
    %p106 = por %p104, %p105
    %p108 = scmp.ne.s32.totalorder %s93, %s107
    %p109 = scmp.eq.s32.totalorder %s20, 0
    %p110 = por %p108, %p109
    %s112 = sadd.s32 %s111, 1
    %p115 = scmp.eq.s32.totalorder %s14, 1
    %p116 = scmp.ne.s32.totalorder %s111, %s113
    %p117 = scmp.eq.s32.totalorder %s14, 0
    %p118 = por %p116, %p117
    %p119 = scmp.ne.s32.totalorder %s111, %s113
    %p120 = scmp.eq.s32.totalorder %s19, 1
    %p121 = por %p119, %p120
    %p122 = scmp.ne.s32.totalorder %s113, %s114
    %p123 = scmp.eq.s32.totalorder %s19, 0
    %p124 = por %p122, %p123
    %p125 = scmp.ne.s32.totalorder %s113, %s114
    %p126 = scmp.eq.s32.totalorder %s20, 1
    %p127 = por %p125, %p126
    %p129 = scmp.ne.s32.totalorder %s114, %s128
    %p130 = scmp.eq.s32.totalorder %s20, 0
    %p131 = por %p129, %p130
    %s133 = sadd.s32 %s132, 1
    %p136 = scmp.eq.s32.totalorder %s14, 1
    %p137 = scmp.ne.s32.totalorder %s132, %s134
    %p138 = scmp.eq.s32.totalorder %s14, 0
    %p139 = por %p137, %p138
    %p140 = scmp.ne.s32.totalorder %s132, %s134
    %p141 = scmp.eq.s32.totalorder %s19, 1
    %p142 = por %p140, %p141
    %p143 = scmp.ne.s32.totalorder %s134, %s135
    %p144 = scmp.eq.s32.totalorder %s19, 0
    %p145 = por %p143, %p144
    %p146 = scmp.ne.s32.totalorder %s134, %s135
    %p147 = scmp.eq.s32.totalorder %s20, 1
    %p148 = por %p146, %p147
    %p150 = scmp.ne.s32.totalorder %s135, %s149
    %p151 = scmp.eq.s32.totalorder %s20, 0
    %p152 = por %p150, %p151
    %s154 = sadd.s32 %s153, 1
    %p157 = scmp.eq.s32.totalorder %s14, 1
    %p158 = scmp.ne.s32.totalorder %s153, %s155
    %p159 = scmp.eq.s32.totalorder %s14, 0
    %p160 = por %p158, %p159
    %p161 = scmp.ne.s32.totalorder %s153, %s155
    %p162 = scmp.eq.s32.totalorder %s19, 1
    %p163 = por %p161, %p162
    %p164 = scmp.ne.s32.totalorder %s155, %s156
    %p165 = scmp.eq.s32.totalorder %s19, 0
    %p166 = por %p164, %p165
    %p167 = scmp.ne.s32.totalorder %s155, %s156
    %p168 = scmp.eq.s32.totalorder %s20, 1
    %p169 = por %p167, %p168
    %p171 = scmp.ne.s32.totalorder %s156, %s170
    %p172 = scmp.eq.s32.totalorder %s20, 0
    %p173 = por %p171, %p172
    %s175 = sadd.s32 %s174, 1
    %p178 = scmp.eq.s32.totalorder %s14, 1
    %p179 = scmp.ne.s32.totalorder %s174, %s176
    %p180 = scmp.eq.s32.totalorder %s14, 0
    %p181 = por %p179, %p180
    %p182 = scmp.ne.s32.totalorder %s174, %s176
    %p183 = scmp.eq.s32.totalorder %s19, 1
    %p184 = por %p182, %p183
    %p185 = scmp.ne.s32.totalorder %s176, %s177
    %p186 = scmp.eq.s32.totalorder %s19, 0
    %p187 = por %p185, %p186
    %p188 = scmp.ne.s32.totalorder %s176, %s177
    %p189 = scmp.eq.s32.totalorder %s20, 1
    %p190 = por %p188, %p189
    %p192 = scmp.ne.s32.totalorder %s177, %s191
    %p193 = scmp.eq.s32.totalorder %s20, 0
    %p194 = por %p192, %p193
    %s195 = ssub.s32 %s14, %s21
    %p196 = scmp.eq.s32.totalorder %s195, 0
    %s198 = sadd.s32 %s197, 1
    %s199 = scalar_select %p196, %s197, %s198
    %p202 = pneg %p196
    %p203 = scmp.eq.s32.totalorder %s14, 1
    %p204 = por %p202, %p203
    %p205 = scmp.ne.s32.totalorder %s197, %s200
    %p206 = scmp.eq.s32.totalorder %s14, 0
    %p207 = por %p205, %p206
    %p208 = scmp.ne.s32.totalorder %s197, %s200
    %p209 = scmp.eq.s32.totalorder %s19, 1
    %p210 = por %p208, %p209
    %p211 = scmp.ne.s32.totalorder %s200, %s201
    %p212 = scmp.eq.s32.totalorder %s19, 0
    %p213 = por %p211, %p212
    %p214 = scmp.ne.s32.totalorder %s200, %s201
    %p215 = scmp.eq.s32.totalorder %s20, 1
    %p216 = por %p214, %p215
    %p218 = scmp.ne.s32.totalorder %s201, %s217
    %p219 = scmp.eq.s32.totalorder %s20, 0
    %p220 = por %p218, %p219
    %p221 = scmp.le.s32.totalorder 1, %s14
    %p222 = scmp.lt.s32.totalorder %s14, 3
    %p223 = pnand %p221, %p222
    %p224 = pneg %p223
    // Predicated region
    $region9: #{mlp_pallas.1} parent=5 // pred_check
      _
    $region10: #{mlp_pallas.1} parent=5 // pred_check_branch
      %226 = sbr.rel (%p223) target = $region12
    $region11: #{mlp_pallas.1} parent=5 // pred_region
      %s227 = ssub.s32 %s14, 1
      // Predicated region
      $region13: #{mlp_pallas.1} parent=11 // pred_check
        %p228 = pneg %p61
      $region14: #{mlp_pallas.1} parent=11 // pred_check_branch
        %230 = sbr.rel (%p228) target = $region16
      $region15: #{mlp_pallas.1} parent=11 // pred_region
        _
      $region16: #{mlp_pallas.1} parent=11 // pred_fallthru
        _
      // Predicated region
      $region17: #{mlp_pallas.1} parent=11 // pred_check
        %p231 = pneg %p82
      $region18: #{mlp_pallas.1} parent=11 // pred_check_branch
        %233 = sbr.rel (%p231) target = $region20
      $region19: #{mlp_pallas.1} parent=11 // pred_region
        _
      $region20: #{mlp_pallas.1} parent=11 // pred_fallthru
        _
      // Predicated region
      $region21: #{mlp_pallas.1} parent=11 // pred_check
        %p234 = pneg %p103
      $region22: #{mlp_pallas.1} parent=11 // pred_check_branch
        %236 = sbr.rel (%p234) target = $region24
      $region23: #{mlp_pallas.1} parent=11 // pred_region
        _
      $region24: #{mlp_pallas.1} parent=11 // pred_fallthru
        _
      // Predicated region
      $region25: #{mlp_pallas.1} parent=11 // pred_check
        %p237 = pneg %p124
      $region26: #{mlp_pallas.1} parent=11 // pred_check_branch
        %239 = sbr.rel (%p237) target = $region28
      $region27: #{mlp_pallas.1} parent=11 // pred_region
        _
      $region28: #{mlp_pallas.1} parent=11 // pred_fallthru
        _
      // Predicated region
      $region29: #{mlp_pallas.1} parent=11 // pred_check
        %p240 = pneg %p145
      $region30: #{mlp_pallas.1} parent=11 // pred_check_branch
        %242 = sbr.rel (%p240) target = $region32
      $region31: #{mlp_pallas.1} parent=11 // pred_region
        _
      $region32: #{mlp_pallas.1} parent=11 // pred_fallthru
        _
      // Predicated region
      $region33: #{mlp_pallas.1} parent=11 // pred_check
        %p243 = pneg %p166
      $region34: #{mlp_pallas.1} parent=11 // pred_check_branch
        %245 = sbr.rel (%p243) target = $region36
      $region35: #{mlp_pallas.1} parent=11 // pred_region
        _
      $region36: #{mlp_pallas.1} parent=11 // pred_fallthru
        _
      // Predicated region
      $region37: #{mlp_pallas.1} parent=11 // pred_check
        %p246 = pneg %p187
      $region38: #{mlp_pallas.1} parent=11 // pred_check_branch
        %248 = sbr.rel (%p246) target = $region40
      $region39: #{mlp_pallas.1} parent=11 // pred_region
        _
      $region40: #{mlp_pallas.1} parent=11 // pred_fallthru
        _
    $region12: #{mlp_pallas.1} parent=5 // pred_fallthru
      _
    %p249 = scmp.lt.s32.totalorder %s14, 2
    // Predicated region
    $region41: #{mlp_pallas.1} parent=5 // pred_check
      %p250 = pneg %p249
    $region42: #{mlp_pallas.1} parent=5 // pred_check_branch
      %252 = sbr.rel (%p250) target = $region44
    $region43: #{mlp_pallas.1} parent=5 // pred_region
      // Predicated region
      $region45: #{mlp_pallas.1} parent=43 // pred_check
        %p253 = pneg %p34
      $region46: #{mlp_pallas.1} parent=43 // pred_check_branch
        %255 = sbr.rel (%p253) target = $region48
      $region47: #{mlp_pallas.1} parent=43 // pred_region
        %s256 = smul.u32 2, %s14
        %p257 = scmp.lt.s32.totalorder %s256, 3
        %s258 = scalar_select %p257, %s256, 3
        %s259 = smul.addr %s258, 4
        %s260 = scalar_lea.vmem %s0, %s259
        %s261 = smul.u32 2, %s14
      $region48: #{mlp_pallas.1} parent=43 // pred_fallthru
        _
    $region44: #{mlp_pallas.1} parent=5 // pred_fallthru
      _
    %p262 = scmp.le.s32.totalorder 1, %s14
    %p263 = scmp.lt.s32.totalorder %s14, 3
    %p264 = pnand %p262, %p263
    %p265 = pneg %p264
    // Predicated region
    $region49: #{mlp_pallas.1} parent=5 // pred_check
      _
    $region50: #{mlp_pallas.1} parent=5 // pred_check_branch
      %267 = sbr.rel (%p264) target = $region52
    $region51: #{mlp_pallas.1} parent=5 // pred_region
      %s268 = ssub.s32 %s14, 1
      %s269 = smul.u32 2, %s19
      %p270 = scmp.lt.s32.totalorder %s269, 3
      %s271 = scalar_select %p270, %s269, 3
      %s272 = smul.addr %s271, 4
      %s273 = scalar_lea.vmem %s0, %s272
      %p274 = pneg %p40
      %p275 = pneg %p37
      %p276 = pneg %p61
      %p277 = pneg %p58
      %p278 = pneg %p82
      %p279 = pneg %p79
      %p280 = pneg %p103
      %p281 = pneg %p100
      %p282 = pneg %p124
      %p283 = pneg %p121
      %p284 = pneg %p145
      %p285 = pneg %p142
      %p286 = pneg %p166
      %p287 = pneg %p163
      %p288 = pneg %p187
      %p289 = pneg %p184
      %p290 = pneg %p213
      %p291 = pneg %p210
      %s292 = smul.u32 2, %s19
      %p293 = scmp.lt.s32.totalorder %s292, 3
      %s294 = scalar_select %p293, %s292, 3
      %s295 = smul.addr %s294, 4
      %s296 = scalar_lea.vmem %s8, %s295
      %s297 = smul.u32 2, %s19
      %p298 = scmp.lt.s32.totalorder %s297, 3
      %s299 = scalar_select %p298, %s297, 3
      %s300 = smul.addr %s299, 4
      %s301 = scalar_lea.vmem %s0, %s300
      %s302 = smul.u32 2, %s19
      %s303 = smul.u32 2, %s19
      %p304 = scmp.lt.s32.totalorder %s303, 3
      %s305 = scalar_select %p304, %s303, 3
      %s306 = smul.addr %s305, 4
      %s307 = scalar_lea.vmem %s8, %s306
      %s308 = smul.u32 2, %s19
      %v309 = vld [vmem:[%s301] sm:$0xff]
      %v310 = vld [vmem:[%s2] sm:$0xff]
      %v311 = vld [vmem:[%s2 + $0x8] sm:$0xff]
      %v312 = vld [vmem:[%s2 + $0x10] sm:$0xff]
      %v313 = vld [vmem:[%s2 + $0x18] sm:$0xff]
      %v314 = vld [vmem:[%s3] sm:$0xff]
      %v315 = vld [vmem:[%s3 + $0x8] sm:$0xff]
      %v316 = vld [vmem:[%s3 + $0x10] sm:$0xff]
      %v317 = vld [vmem:[%s3 + $0x18] sm:$0xff]
      %319 = vset.pattern.permute.xlu0 0
      %320 = vperm.xlu0 %319, %v314
      %v321 = vpop.permute.xlu0 %320
      %324 = vset.pattern.permute.xlu0 0
      %325 = vperm.xlu0 %324, %v315
      %v326 = vpop.permute.xlu0 %325
      %329 = vset.pattern.permute.xlu0 0
      %330 = vperm.xlu0 %329, %v316
      %v331 = vpop.permute.xlu0 %330
      %334 = vset.pattern.permute.xlu0 0
      %335 = vperm.xlu0 %334, %v317
      %v336 = vpop.permute.xlu0 %335
      %v339 = vcombine.high %v309, %v309
      %vm340 = vcmask 31744
      %v342 = vsel %vm340, %v310, 0
      %v345 = vsel %vm340, %v311, 0
      %v348 = vsel %vm340, %v312, 0
      %v351 = vsel %vm340, %v313, 0
      %vm353 = vcmask 1043456
      %v354 = vsel %vm353, %v309, 0
      %v356 = vsel %vm353, %v339, 0
      %358 = vmatprep.subr.mxu0 0.0
      %359 = vmatpush1.msra.mxu0 0.0
      %360 = vmatprep.subr.mxu0 0.0
      %361 = vmatpush1.msra.mxu0 0.0
      %362 = vmatprep.subr.mxu0 0.0
      %363 = vmatpush1.msra.mxu0 0.0
      %364 = vmatprep.subr.mxu0 0.0
      %365 = vmatpush1.msra.mxu0 0.0
      %366 = vmatprep.subr.mxu0 0.0
      %367 = vmatpush1.msra.mxu0 0.0
      %368 = vmatprep.subr.mxu0 0.0
      %369 = vmatpush1.msra.mxu0 0.0
      %370 = vmatprep.subr.mxu0 0.0
      %371 = vmatpush1.msra.mxu0 0.0
      %372 = vmatprep.subr.mxu0 0.0
      %373 = vmatpush1.msra.mxu0 0.0
      %374 = vmatprep.subr.mxu0 0.0
      %375 = vmatpush1.msra.mxu0 0.0
      %376 = vmatprep.subr.mxu0 0.0
      %377 = vmatpush1.msra.mxu0 0.0
      %378 = vmatprep.subr.mxu0 0.0
      %379 = vmatpush1.msra.mxu0 0.0
      %380 = vmatprep.subr.mxu0 0.0
      %381 = vmatpush1.msra.mxu0 0.0
      %382 = vmatprep.subr.mxu0 0.0
      %383 = vmatpush1.msra.mxu0 0.0
      %384 = vmatprep.subr.mxu0 0.0
      %385 = vmatpush1.msra.mxu0 0.0
      %386 = vmatprep.subr.mxu0 0.0
      %387 = vmatpush1.msra.mxu0 0.0
      %388 = vmatprep.subr.mxu0 %v356
      %389 = vmatpush1.msra.mxu0 %v354
      %390 = vmatprep.subr.mxu0 0.0
      %391 = vmatpush2.msra.mxu0 0.0
      %392 = vmatprep.subr.mxu0 0.0
      %393 = vmatpush2.msra.mxu0 0.0
      %394 = vmatprep.subr.mxu0 0.0
      %395 = vmatpush2.msra.mxu0 0.0
      %396 = vmatprep.subr.mxu0 0.0
      %397 = vmatpush2.msra.mxu0 0.0
      %398 = vmatprep.subr.mxu0 0.0
      %399 = vmatpush2.msra.mxu0 0.0
      %400 = vmatprep.subr.mxu0 0.0
      %401 = vmatpush2.msra.mxu0 0.0
      %402 = vmatprep.subr.mxu0 0.0
      %403 = vmatpush2.msra.mxu0 0.0
      %404 = vmatprep.subr.mxu0 0.0
      %405 = vmatpush2.msra.mxu0 0.0
      %406 = vmatprep.subr.mxu0 0.0
      %407 = vmatpush2.msra.mxu0 0.0
      %408 = vmatprep.subr.mxu0 0.0
      %409 = vmatpush2.msra.mxu0 0.0
      %410 = vmatprep.subr.mxu0 0.0
      %411 = vmatpush2.msra.mxu0 0.0
      %412 = vmatprep.subr.mxu0 0.0
      %413 = vmatpush2.msra.mxu0 0.0
      %414 = vmatprep.subr.mxu0 0.0
      %415 = vmatpush2.msra.mxu0 0.0
      %416 = vmatprep.subr.mxu0 0.0
      %417 = vmatpush2.msra.mxu0 0.0
      %418 = vmatprep.subr.mxu0 0.0
      %419 = vmatpush2.msra.mxu0 0.0
      %420 = vmatprep.subr.mxu0 0.0
      %421 = vmatpush2.msra.mxu0 0.0
      %422 = vmatprep.mubr.f32.mxu0 0.0
      %423 = vmatmul.mubr.f32.gmra.mxu0 %v342
      %v424 = vpop.f32.mrf.mxu0
      %v425 = vadd.f32 %v321, %v424
      %v426 = vpop.f32.mrf.mxu0
      %v427 = vadd.f32 %v321, %v426
      %428 = vmatprep.mubr.f32.mxu0 0.0
      %429 = vmatmul.mubr.f32.gmra.mxu0 %v345
      %v430 = vpop.f32.mrf.mxu0
      %v431 = vadd.f32 %v326, %v430
      %v432 = vpop.f32.mrf.mxu0
      %v433 = vadd.f32 %v326, %v432
      %434 = vmatprep.mubr.f32.mxu0 0.0
      %435 = vmatmul.mubr.f32.gmra.mxu0 %v348
      %v436 = vpop.f32.mrf.mxu0
      %v437 = vadd.f32 %v331, %v436
      %v438 = vpop.f32.mrf.mxu0
      %v439 = vadd.f32 %v331, %v438
      %440 = vmatprep.mubr.f32.mxu0 0.0
      %441 = vmatmul.mubr.f32.gmra.mxu0 %v351
      %v442 = vpop.f32.mrf.mxu0
      %v443 = vadd.f32 %v336, %v442
      %v444 = vpop.f32.mrf.mxu0
      %v445 = vadd.f32 %v336, %v444
      %446 = vdwg.mxu0
      %v447 = vld [vmem:[%s1] sm:$0xff]
      %v448 = vld [vmem:[%s1 + $0x8] sm:$0xff]
      %v449 = vld [vmem:[%s1 + $0x10] sm:$0x1]
      %v450 = vld [vmem:[%s1 + $0x18] sm:$0x1]
      %v451 = vld [vmem:[%s4] sm:$0xff]
      %v452 = vld [vmem:[%s4 + $0x8] sm:$0xff]
      %v453 = vld [vmem:[%s4 + $0x10] sm:$0xff]
      %v454 = vld [vmem:[%s4 + $0x18] sm:$0xff]
      %455 = vrot.lane.b32.xlu0 %v425, 17
      %v456 = vpop.permute.xlu0 %455
      %457 = vrot.lane.b32.xlu0 %v431, 17
      %v458 = vpop.permute.xlu0 %457
      %459 = vrot.lane.b32.xlu0 %v437, 17
      %v460 = vpop.permute.xlu0 %459
      %461 = vrot.lane.b32.xlu0 %v443, 17
      %v462 = vpop.permute.xlu0 %461
      %463 = vrot.lane.b32.xlu0 %v427, 17
      %v464 = vpop.permute.xlu0 %463
      %465 = vrot.lane.b32.xlu0 %v433, 17
      %v466 = vpop.permute.xlu0 %465
      %467 = vrot.lane.b32.xlu0 %v439, 17
      %v468 = vpop.permute.xlu0 %467
      %469 = vrot.lane.b32.xlu0 %v445, 17
      %v470 = vpop.permute.xlu0 %469
      %v471 = vlaneseq
      %v472 = vand.u32 %v471, 127
      %vm473 = vcmp.lt.s32.totalorder %v472, 17
      %v474 = vsel %vm473, %v456, %v464
      %v475 = vsel %vm473, %v458, %v466
      %v476 = vsel %vm473, %v460, %v468
      %v477 = vsel %vm473, %v462, %v470
      %v478 = vsel %vm473, %v464, %v456
      %v479 = vsel %vm473, %v466, %v458
      %v480 = vsel %vm473, %v468, %v460
      %v481 = vsel %vm473, %v470, %v462
      %v482 = vlaneseq
      %v483 = vshrl.u32 %v482, 7
      %v484 = vsub.s32 0, %v483
      %v485 = vrot.slane %v447, %v484
      %v486 = vlaneseq
      %v487 = vshrl.u32 %v486, 7
      %v488 = vsub.s32 0, %v487
      %v489 = vrot.slane %v448, %v488
      %v490 = vmul.f32 %v478, %v485
      %v491 = vmul.f32 %v474, %v489
      %v492 = vmul.f32 %v479, %v485
      %v493 = vmul.f32 %v475, %v489
      %v494 = vmul.f32 %v480, %v485
      %v495 = vmul.f32 %v476, %v489
      %v496 = vmul.f32 %v481, %v485
      %v497 = vmul.f32 %v477, %v489
      %499 = vset.pattern.permute.xlu0 0
      %500 = vperm.xlu0 %499, %v451
      %v501 = vpop.permute.xlu0 %500
      %504 = vset.pattern.permute.xlu0 0
      %505 = vperm.xlu0 %504, %v452
      %v506 = vpop.permute.xlu0 %505
      %509 = vset.pattern.permute.xlu0 0
      %510 = vperm.xlu0 %509, %v453
      %v511 = vpop.permute.xlu0 %510
      %514 = vset.pattern.permute.xlu0 0
      %515 = vperm.xlu0 %514, %v454
      %v516 = vpop.permute.xlu0 %515
      %v518 = vmul.f32 %v490, %v501
      %v519 = vmul.f32 %v491, %v501
      %v520 = vmul.f32 %v492, %v506
      %v521 = vmul.f32 %v493, %v506
      %v522 = vmul.f32 %v494, %v511
      %v523 = vmul.f32 %v495, %v511
      %v524 = vmul.f32 %v496, %v516
      %v525 = vmul.f32 %v497, %v516
      %v526 = vadd.f32 %v518, 0.0
      %v527 = vadd.f32 %v519, 0.0
      %v528 = vadd.f32 %v520, 0.0
      %v529 = vadd.f32 %v521, 0.0
      %v530 = vadd.f32 %v522, 0.0
      %v531 = vadd.f32 %v523, 0.0
      %v532 = vadd.f32 %v524, 0.0
      %v533 = vadd.f32 %v525, 0.0
      %534 = vrot.lane.b32.xlu0 %v425, 16
      %v535 = vpop.permute.xlu0 %534
      %536 = vrot.lane.b32.xlu0 %v431, 16
      %v537 = vpop.permute.xlu0 %536
      %538 = vrot.lane.b32.xlu0 %v437, 16
      %v539 = vpop.permute.xlu0 %538
      %540 = vrot.lane.b32.xlu0 %v443, 16
      %v541 = vpop.permute.xlu0 %540
      %542 = vrot.lane.b32.xlu0 %v427, 16
      %v543 = vpop.permute.xlu0 %542
      %544 = vrot.lane.b32.xlu0 %v433, 16
      %v545 = vpop.permute.xlu0 %544
      %546 = vrot.lane.b32.xlu0 %v439, 16
      %v547 = vpop.permute.xlu0 %546
      %548 = vrot.lane.b32.xlu0 %v445, 16
      %v549 = vpop.permute.xlu0 %548
      %vm550 = vcmp.lt.s32.totalorder %v472, 16
      %v551 = vsel %vm550, %v535, %v543
      %v552 = vsel %vm550, %v537, %v545
      %v553 = vsel %vm550, %v539, %v547
      %v554 = vsel %vm550, %v541, %v549
      %v555 = vsel %vm550, %v543, %v535
      %v556 = vsel %vm550, %v545, %v537
      %v557 = vsel %vm550, %v547, %v539
      %v558 = vsel %vm550, %v549, %v541
      %v559 = vlaneseq
      %v560 = vshrl.u32 %v559, 7
      %v561 = vsub.s32 1, %v560
      %v562 = vrot.slane %v447, %v561
      %v563 = vlaneseq
      %v564 = vshrl.u32 %v563, 7
      %v565 = vsub.s32 1, %v564
      %v566 = vrot.slane %v448, %v565
      %v567 = vmul.f32 %v555, %v562
      %v568 = vmul.f32 %v551, %v566
      %v569 = vmul.f32 %v556, %v562
      %v570 = vmul.f32 %v552, %v566
      %v571 = vmul.f32 %v557, %v562
      %v572 = vmul.f32 %v553, %v566
      %v573 = vmul.f32 %v558, %v562
      %v574 = vmul.f32 %v554, %v566
      %575 = vset.pattern.permute.xlu0 1
      %576 = vperm.xlu0 %575, %v451
      %v577 = vpop.permute.xlu0 %576
      %579 = vset.pattern.permute.xlu0 1
      %580 = vperm.xlu0 %579, %v452
      %v581 = vpop.permute.xlu0 %580
      %583 = vset.pattern.permute.xlu0 1
      %584 = vperm.xlu0 %583, %v453
      %v585 = vpop.permute.xlu0 %584
      %587 = vset.pattern.permute.xlu0 1
      %588 = vperm.xlu0 %587, %v454
      %v589 = vpop.permute.xlu0 %588
      %v591 = vmul.f32 %v567, %v577
      %v592 = vmul.f32 %v568, %v577
      %v593 = vmul.f32 %v569, %v581
      %v594 = vmul.f32 %v570, %v581
      %v595 = vmul.f32 %v571, %v585
      %v596 = vmul.f32 %v572, %v585
      %v597 = vmul.f32 %v573, %v589
      %v598 = vmul.f32 %v574, %v589
      %v599 = vadd.f32 %v526, %v591
      %v600 = vadd.f32 %v527, %v592
      %v601 = vadd.f32 %v528, %v593
      %v602 = vadd.f32 %v529, %v594
      %v603 = vadd.f32 %v530, %v595
      %v604 = vadd.f32 %v531, %v596
      %v605 = vadd.f32 %v532, %v597
      %v606 = vadd.f32 %v533, %v598
      %607 = vrot.lane.b32.xlu0 %v425, 15
      %v608 = vpop.permute.xlu0 %607
      %609 = vrot.lane.b32.xlu0 %v431, 15
      %v610 = vpop.permute.xlu0 %609
      %611 = vrot.lane.b32.xlu0 %v437, 15
      %v612 = vpop.permute.xlu0 %611
      %613 = vrot.lane.b32.xlu0 %v443, 15
      %v614 = vpop.permute.xlu0 %613
      %615 = vrot.lane.b32.xlu0 %v427, 15
      %v616 = vpop.permute.xlu0 %615
      %617 = vrot.lane.b32.xlu0 %v433, 15
      %v618 = vpop.permute.xlu0 %617
      %619 = vrot.lane.b32.xlu0 %v439, 15
      %v620 = vpop.permute.xlu0 %619
      %621 = vrot.lane.b32.xlu0 %v445, 15
      %v622 = vpop.permute.xlu0 %621
      %vm623 = vcmp.lt.s32.totalorder %v472, 15
      %v624 = vsel %vm623, %v608, %v616
      %v625 = vsel %vm623, %v610, %v618
      %v626 = vsel %vm623, %v612, %v620
      %v627 = vsel %vm623, %v614, %v622
      %v628 = vsel %vm623, %v616, %v608
      %v629 = vsel %vm623, %v618, %v610
      %v630 = vsel %vm623, %v620, %v612
      %v631 = vsel %vm623, %v622, %v614
      %v632 = vlaneseq
      %v633 = vshrl.u32 %v632, 7
      %v634 = vsub.s32 2, %v633
      %v635 = vrot.slane %v447, %v634
      %v636 = vlaneseq
      %v637 = vshrl.u32 %v636, 7
      %v638 = vsub.s32 2, %v637
      %v639 = vrot.slane %v448, %v638
      %v640 = vmul.f32 %v628, %v635
      %v641 = vmul.f32 %v624, %v639
      %v642 = vmul.f32 %v629, %v635
      %v643 = vmul.f32 %v625, %v639
      %v644 = vmul.f32 %v630, %v635
      %v645 = vmul.f32 %v626, %v639
      %v646 = vmul.f32 %v631, %v635
      %v647 = vmul.f32 %v627, %v639
      %648 = vset.pattern.permute.xlu0 2
      %649 = vperm.xlu0 %648, %v451
      %v650 = vpop.permute.xlu0 %649
      %652 = vset.pattern.permute.xlu0 2
      %653 = vperm.xlu0 %652, %v452
      %v654 = vpop.permute.xlu0 %653
      %656 = vset.pattern.permute.xlu0 2
      %657 = vperm.xlu0 %656, %v453
      %v658 = vpop.permute.xlu0 %657
      %660 = vset.pattern.permute.xlu0 2
      %661 = vperm.xlu0 %660, %v454
      %v662 = vpop.permute.xlu0 %661
      %v664 = vmul.f32 %v640, %v650
      %v665 = vmul.f32 %v641, %v650
      %v666 = vmul.f32 %v642, %v654
      %v667 = vmul.f32 %v643, %v654
      %v668 = vmul.f32 %v644, %v658
      %v669 = vmul.f32 %v645, %v658
      %v670 = vmul.f32 %v646, %v662
      %v671 = vmul.f32 %v647, %v662
      %v672 = vadd.f32 %v599, %v664
      %v673 = vadd.f32 %v600, %v665
      %v674 = vadd.f32 %v601, %v666
      %v675 = vadd.f32 %v602, %v667
      %v676 = vadd.f32 %v603, %v668
      %v677 = vadd.f32 %v604, %v669
      %v678 = vadd.f32 %v605, %v670
      %v679 = vadd.f32 %v606, %v671
      %680 = vrot.lane.b32.xlu0 %v425, 1
      %v681 = vpop.permute.xlu0 %680
      %682 = vrot.lane.b32.xlu0 %v431, 1
      %v683 = vpop.permute.xlu0 %682
      %684 = vrot.lane.b32.xlu0 %v437, 1
      %v685 = vpop.permute.xlu0 %684
      %686 = vrot.lane.b32.xlu0 %v443, 1
      %v687 = vpop.permute.xlu0 %686
      %688 = vrot.lane.b32.xlu0 %v427, 1
      %v689 = vpop.permute.xlu0 %688
      %690 = vrot.lane.b32.xlu0 %v433, 1
      %v691 = vpop.permute.xlu0 %690
      %692 = vrot.lane.b32.xlu0 %v439, 1
      %v693 = vpop.permute.xlu0 %692
      %694 = vrot.lane.b32.xlu0 %v445, 1
      %v695 = vpop.permute.xlu0 %694
      %vm696 = vcmp.lt.s32.totalorder %v472, 1
      %v697 = vsel %vm696, %v681, %v689
      %v698 = vsel %vm696, %v683, %v691
      %v699 = vsel %vm696, %v685, %v693
      %v700 = vsel %vm696, %v687, %v695
      %v701 = vsel %vm696, %v689, %v681
      %v702 = vsel %vm696, %v691, %v683
      %v703 = vsel %vm696, %v693, %v685
      %v704 = vsel %vm696, %v695, %v687
      %v705 = vlaneseq
      %v706 = vshrl.u32 %v705, 7
      %v707 = vsub.s32 3, %v706
      %v708 = vrot.slane %v447, %v707
      %v709 = vlaneseq
      %v710 = vshrl.u32 %v709, 7
      %v711 = vsub.s32 3, %v710
      %v712 = vrot.slane %v448, %v711
      %v713 = vmul.f32 %v701, %v708
      %v714 = vmul.f32 %v697, %v712
      %v715 = vmul.f32 %v702, %v708
      %v716 = vmul.f32 %v698, %v712
      %v717 = vmul.f32 %v703, %v708
      %v718 = vmul.f32 %v699, %v712
      %v719 = vmul.f32 %v704, %v708
      %v720 = vmul.f32 %v700, %v712
      %721 = vset.pattern.permute.xlu0 3
      %722 = vperm.xlu0 %721, %v451
      %v723 = vpop.permute.xlu0 %722
      %725 = vset.pattern.permute.xlu0 3
      %726 = vperm.xlu0 %725, %v452
      %v727 = vpop.permute.xlu0 %726
      %729 = vset.pattern.permute.xlu0 3
      %730 = vperm.xlu0 %729, %v453
      %v731 = vpop.permute.xlu0 %730
      %733 = vset.pattern.permute.xlu0 3
      %734 = vperm.xlu0 %733, %v454
      %v735 = vpop.permute.xlu0 %734
      %v737 = vmul.f32 %v713, %v723
      %v738 = vmul.f32 %v714, %v723
      %v739 = vmul.f32 %v715, %v727
      %v740 = vmul.f32 %v716, %v727
      %v741 = vmul.f32 %v717, %v731
      %v742 = vmul.f32 %v718, %v731
      %v743 = vmul.f32 %v719, %v735
      %v744 = vmul.f32 %v720, %v735
      %v745 = vadd.f32 %v672, %v737
      %v746 = vadd.f32 %v673, %v738
      %v747 = vadd.f32 %v674, %v739
      %v748 = vadd.f32 %v675, %v740
      %v749 = vadd.f32 %v676, %v741
      %v750 = vadd.f32 %v677, %v742
      %v751 = vadd.f32 %v678, %v743
      %v752 = vadd.f32 %v679, %v744
      %753 = vset.pattern.permute.xlu0 4
      %754 = vperm.xlu0 %753, %v451
      %v755 = vpop.permute.xlu0 %754
      %757 = vset.pattern.permute.xlu0 4
      %758 = vperm.xlu0 %757, %v452
      %v759 = vpop.permute.xlu0 %758
      %761 = vset.pattern.permute.xlu0 4
      %762 = vperm.xlu0 %761, %v453
      %v763 = vpop.permute.xlu0 %762
      %765 = vset.pattern.permute.xlu0 4
      %766 = vperm.xlu0 %765, %v454
      %v767 = vpop.permute.xlu0 %766
      %v769 = vmul.f32 %v425, %v755
      %v770 = vmul.f32 %v427, %v755
      %v771 = vmul.f32 %v431, %v759
      %v772 = vmul.f32 %v433, %v759
      %v773 = vmul.f32 %v437, %v763
      %v774 = vmul.f32 %v439, %v763
      %v775 = vmul.f32 %v443, %v767
      %v776 = vmul.f32 %v445, %v767
      %v777 = vadd.f32 %v745, %v769
      %v778 = vadd.f32 %v746, %v770
      %v779 = vadd.f32 %v747, %v771
      %v780 = vadd.f32 %v748, %v772
      %v781 = vadd.f32 %v749, %v773
      %v782 = vadd.f32 %v750, %v774
      %v783 = vadd.f32 %v751, %v775
      %v784 = vadd.f32 %v752, %v776
      %785 = vrot.lane.b32.xlu0 %v425, 127
      %v786 = vpop.permute.xlu0 %785
      %787 = vrot.lane.b32.xlu0 %v431, 127
      %v788 = vpop.permute.xlu0 %787
      %789 = vrot.lane.b32.xlu0 %v437, 127
      %v790 = vpop.permute.xlu0 %789
      %791 = vrot.lane.b32.xlu0 %v443, 127
      %v792 = vpop.permute.xlu0 %791
      %793 = vrot.lane.b32.xlu0 %v427, 127
      %v794 = vpop.permute.xlu0 %793
      %795 = vrot.lane.b32.xlu0 %v433, 127
      %v796 = vpop.permute.xlu0 %795
      %797 = vrot.lane.b32.xlu0 %v439, 127
      %v798 = vpop.permute.xlu0 %797
      %799 = vrot.lane.b32.xlu0 %v445, 127
      %v800 = vpop.permute.xlu0 %799
      %vm801 = vcmp.lt.s32.totalorder %v472, 127
      %v802 = vsel %vm801, %v786, %v794
      %v803 = vsel %vm801, %v788, %v796
      %v804 = vsel %vm801, %v790, %v798
      %v805 = vsel %vm801, %v792, %v800
      %v806 = vsel %vm801, %v794, %v786
      %v807 = vsel %vm801, %v796, %v788
      %v808 = vsel %vm801, %v798, %v790
      %v809 = vsel %vm801, %v800, %v792
      %v810 = vlaneseq
      %v811 = vshrl.u32 %v810, 7
      %v812 = vsub.s32 5, %v811
      %v813 = vrot.slane %v447, %v812
      %v814 = vlaneseq
      %v815 = vshrl.u32 %v814, 7
      %v816 = vsub.s32 5, %v815
      %v817 = vrot.slane %v448, %v816
      %v818 = vmul.f32 %v802, %v813
      %v819 = vmul.f32 %v806, %v817
      %v820 = vmul.f32 %v803, %v813
      %v821 = vmul.f32 %v807, %v817
      %v822 = vmul.f32 %v804, %v813
      %v823 = vmul.f32 %v808, %v817
      %v824 = vmul.f32 %v805, %v813
      %v825 = vmul.f32 %v809, %v817
      %826 = vset.pattern.permute.xlu0 5
      %827 = vperm.xlu0 %826, %v451
      %v828 = vpop.permute.xlu0 %827
      %830 = vset.pattern.permute.xlu0 5
      %831 = vperm.xlu0 %830, %v452
      %v832 = vpop.permute.xlu0 %831
      %834 = vset.pattern.permute.xlu0 5
      %835 = vperm.xlu0 %834, %v453
      %v836 = vpop.permute.xlu0 %835
      %838 = vset.pattern.permute.xlu0 5
      %839 = vperm.xlu0 %838, %v454
      %v840 = vpop.permute.xlu0 %839
      %v842 = vmul.f32 %v818, %v828
      %v843 = vmul.f32 %v819, %v828
      %v844 = vmul.f32 %v820, %v832
      %v845 = vmul.f32 %v821, %v832
      %v846 = vmul.f32 %v822, %v836
      %v847 = vmul.f32 %v823, %v836
      %v848 = vmul.f32 %v824, %v840
      %v849 = vmul.f32 %v825, %v840
      %v850 = vadd.f32 %v777, %v842
      %v851 = vadd.f32 %v778, %v843
      %v852 = vadd.f32 %v779, %v844
      %v853 = vadd.f32 %v780, %v845
      %v854 = vadd.f32 %v781, %v846
      %v855 = vadd.f32 %v782, %v847
      %v856 = vadd.f32 %v783, %v848
      %v857 = vadd.f32 %v784, %v849
      %858 = vrot.lane.b32.xlu0 %v425, 113
      %v859 = vpop.permute.xlu0 %858
      %860 = vrot.lane.b32.xlu0 %v431, 113
      %v861 = vpop.permute.xlu0 %860
      %862 = vrot.lane.b32.xlu0 %v437, 113
      %v863 = vpop.permute.xlu0 %862
      %864 = vrot.lane.b32.xlu0 %v443, 113
      %v865 = vpop.permute.xlu0 %864
      %866 = vrot.lane.b32.xlu0 %v427, 113
      %v867 = vpop.permute.xlu0 %866
      %868 = vrot.lane.b32.xlu0 %v433, 113
      %v869 = vpop.permute.xlu0 %868
      %870 = vrot.lane.b32.xlu0 %v439, 113
      %v871 = vpop.permute.xlu0 %870
      %872 = vrot.lane.b32.xlu0 %v445, 113
      %v873 = vpop.permute.xlu0 %872
      %vm874 = vcmp.lt.s32.totalorder %v472, 113
      %v875 = vsel %vm874, %v859, %v867
      %v876 = vsel %vm874, %v861, %v869
      %v877 = vsel %vm874, %v863, %v871
      %v878 = vsel %vm874, %v865, %v873
      %v879 = vsel %vm874, %v867, %v859
      %v880 = vsel %vm874, %v869, %v861
      %v881 = vsel %vm874, %v871, %v863
      %v882 = vsel %vm874, %v873, %v865
      %v883 = vlaneseq
      %v884 = vshrl.u32 %v883, 7
      %v885 = vsub.s32 6, %v884
      %v886 = vrot.slane %v447, %v885
      %v887 = vlaneseq
      %v888 = vshrl.u32 %v887, 7
      %v889 = vsub.s32 6, %v888
      %v890 = vrot.slane %v448, %v889
      %v891 = vmul.f32 %v875, %v886
      %v892 = vmul.f32 %v879, %v890
      %v893 = vmul.f32 %v876, %v886
      %v894 = vmul.f32 %v880, %v890
      %v895 = vmul.f32 %v877, %v886
      %v896 = vmul.f32 %v881, %v890
      %v897 = vmul.f32 %v878, %v886
      %v898 = vmul.f32 %v882, %v890
      %899 = vset.pattern.permute.xlu0 6
      %900 = vperm.xlu0 %899, %v451
      %v901 = vpop.permute.xlu0 %900
      %903 = vset.pattern.permute.xlu0 6
      %904 = vperm.xlu0 %903, %v452
      %v905 = vpop.permute.xlu0 %904
      %907 = vset.pattern.permute.xlu0 6
      %908 = vperm.xlu0 %907, %v453
      %v909 = vpop.permute.xlu0 %908
      %911 = vset.pattern.permute.xlu0 6
      %912 = vperm.xlu0 %911, %v454
      %v913 = vpop.permute.xlu0 %912
      %v915 = vmul.f32 %v891, %v901
      %v916 = vmul.f32 %v892, %v901
      %v917 = vmul.f32 %v893, %v905
      %v918 = vmul.f32 %v894, %v905
      %v919 = vmul.f32 %v895, %v909
      %v920 = vmul.f32 %v896, %v909
      %v921 = vmul.f32 %v897, %v913
      %v922 = vmul.f32 %v898, %v913
      %v923 = vadd.f32 %v850, %v915
      %v924 = vadd.f32 %v851, %v916
      %v925 = vadd.f32 %v852, %v917
      %v926 = vadd.f32 %v853, %v918
      %v927 = vadd.f32 %v854, %v919
      %v928 = vadd.f32 %v855, %v920
      %v929 = vadd.f32 %v856, %v921
      %v930 = vadd.f32 %v857, %v922
      %931 = vrot.lane.b32.xlu0 %v425, 112
      %v932 = vpop.permute.xlu0 %931
      %933 = vrot.lane.b32.xlu0 %v431, 112
      %v934 = vpop.permute.xlu0 %933
      %935 = vrot.lane.b32.xlu0 %v437, 112
      %v936 = vpop.permute.xlu0 %935
      %937 = vrot.lane.b32.xlu0 %v443, 112
      %v938 = vpop.permute.xlu0 %937
      %939 = vrot.lane.b32.xlu0 %v427, 112
      %v940 = vpop.permute.xlu0 %939
      %941 = vrot.lane.b32.xlu0 %v433, 112
      %v942 = vpop.permute.xlu0 %941
      %943 = vrot.lane.b32.xlu0 %v439, 112
      %v944 = vpop.permute.xlu0 %943
      %945 = vrot.lane.b32.xlu0 %v445, 112
      %v946 = vpop.permute.xlu0 %945
      %vm947 = vcmp.lt.s32.totalorder %v472, 112
      %v948 = vsel %vm947, %v932, %v940
      %v949 = vsel %vm947, %v934, %v942
      %v950 = vsel %vm947, %v936, %v944
      %v951 = vsel %vm947, %v938, %v946
      %v952 = vsel %vm947, %v940, %v932
      %v953 = vsel %vm947, %v942, %v934
      %v954 = vsel %vm947, %v944, %v936
      %v955 = vsel %vm947, %v946, %v938
      %v956 = vlaneseq
      %v957 = vshrl.u32 %v956, 7
      %v958 = vsub.s32 7, %v957
      %v959 = vrot.slane %v447, %v958
      %v960 = vlaneseq
      %v961 = vshrl.u32 %v960, 7
      %v962 = vsub.s32 7, %v961
      %v963 = vrot.slane %v448, %v962
      %v964 = vmul.f32 %v948, %v959
      %v965 = vmul.f32 %v952, %v963
      %v966 = vmul.f32 %v949, %v959
      %v967 = vmul.f32 %v953, %v963
      %v968 = vmul.f32 %v950, %v959
      %v969 = vmul.f32 %v954, %v963
      %v970 = vmul.f32 %v951, %v959
      %v971 = vmul.f32 %v955, %v963
      %972 = vset.pattern.permute.xlu0 7
      %973 = vperm.xlu0 %972, %v451
      %v974 = vpop.permute.xlu0 %973
      %976 = vset.pattern.permute.xlu0 7
      %977 = vperm.xlu0 %976, %v452
      %v978 = vpop.permute.xlu0 %977
      %980 = vset.pattern.permute.xlu0 7
      %981 = vperm.xlu0 %980, %v453
      %v982 = vpop.permute.xlu0 %981
      %984 = vset.pattern.permute.xlu0 7
      %985 = vperm.xlu0 %984, %v454
      %v986 = vpop.permute.xlu0 %985
      %v988 = vmul.f32 %v964, %v974
      %v989 = vmul.f32 %v965, %v974
      %v990 = vmul.f32 %v966, %v978
      %v991 = vmul.f32 %v967, %v978
      %v992 = vmul.f32 %v968, %v982
      %v993 = vmul.f32 %v969, %v982
      %v994 = vmul.f32 %v970, %v986
      %v995 = vmul.f32 %v971, %v986
      %v996 = vadd.f32 %v923, %v988
      %v997 = vadd.f32 %v924, %v989
      %v998 = vadd.f32 %v925, %v990
      %v999 = vadd.f32 %v926, %v991
      %v1000 = vadd.f32 %v927, %v992
      %v1001 = vadd.f32 %v928, %v993
      %v1002 = vadd.f32 %v929, %v994
      %v1003 = vadd.f32 %v930, %v995
      %1004 = vrot.lane.b32.xlu0 %v425, 111
      %v1005 = vpop.permute.xlu0 %1004
      %1006 = vrot.lane.b32.xlu0 %v431, 111
      %v1007 = vpop.permute.xlu0 %1006
      %1008 = vrot.lane.b32.xlu0 %v437, 111
      %v1009 = vpop.permute.xlu0 %1008
      %1010 = vrot.lane.b32.xlu0 %v443, 111
      %v1011 = vpop.permute.xlu0 %1010
      %1012 = vrot.lane.b32.xlu0 %v427, 111
      %v1013 = vpop.permute.xlu0 %1012
      %1014 = vrot.lane.b32.xlu0 %v433, 111
      %v1015 = vpop.permute.xlu0 %1014
      %1016 = vrot.lane.b32.xlu0 %v439, 111
      %v1017 = vpop.permute.xlu0 %1016
      %1018 = vrot.lane.b32.xlu0 %v445, 111
      %v1019 = vpop.permute.xlu0 %1018
      %vm1020 = vcmp.lt.s32.totalorder %v472, 111
      %v1021 = vsel %vm1020, %v1005, %v1013
      %v1022 = vsel %vm1020, %v1007, %v1015
      %v1023 = vsel %vm1020, %v1009, %v1017
      %v1024 = vsel %vm1020, %v1011, %v1019
      %v1025 = vsel %vm1020, %v1013, %v1005
      %v1026 = vsel %vm1020, %v1015, %v1007
      %v1027 = vsel %vm1020, %v1017, %v1009
      %v1028 = vsel %vm1020, %v1019, %v1011
      %v1029 = vlaneseq
      %v1030 = vshrl.u32 %v1029, 7
      %v1031 = vsub.s32 0, %v1030
      %v1032 = vrot.slane %v449, %v1031
      %v1033 = vlaneseq
      %v1034 = vshrl.u32 %v1033, 7
      %v1035 = vsub.s32 0, %v1034
      %v1036 = vrot.slane %v450, %v1035
      %v1037 = vmul.f32 %v1021, %v1032
      %v1038 = vmul.f32 %v1025, %v1036
      %v1039 = vmul.f32 %v1022, %v1032
      %v1040 = vmul.f32 %v1026, %v1036
      %v1041 = vmul.f32 %v1023, %v1032
      %v1042 = vmul.f32 %v1027, %v1036
      %v1043 = vmul.f32 %v1024, %v1032
      %v1044 = vmul.f32 %v1028, %v1036
      %1045 = vset.pattern.permute.xlu0 8
      %1046 = vperm.xlu0 %1045, %v451
      %v1047 = vpop.permute.xlu0 %1046
      %1049 = vset.pattern.permute.xlu0 8
      %1050 = vperm.xlu0 %1049, %v452
      %v1051 = vpop.permute.xlu0 %1050
      %1053 = vset.pattern.permute.xlu0 8
      %1054 = vperm.xlu0 %1053, %v453
      %v1055 = vpop.permute.xlu0 %1054
      %1057 = vset.pattern.permute.xlu0 8
      %1058 = vperm.xlu0 %1057, %v454
      %v1059 = vpop.permute.xlu0 %1058
      %v1061 = vmul.f32 %v1037, %v1047
      %v1062 = vmul.f32 %v1038, %v1047
      %v1063 = vmul.f32 %v1039, %v1051
      %v1064 = vmul.f32 %v1040, %v1051
      %v1065 = vmul.f32 %v1041, %v1055
      %v1066 = vmul.f32 %v1042, %v1055
      %v1067 = vmul.f32 %v1043, %v1059
      %v1068 = vmul.f32 %v1044, %v1059
      %v1069 = vadd.f32 %v996, %v1061
      %v1070 = vadd.f32 %v997, %v1062
      %v1071 = vadd.f32 %v998, %v1063
      %v1072 = vadd.f32 %v999, %v1064
      %v1073 = vadd.f32 %v1000, %v1065
      %v1074 = vadd.f32 %v1001, %v1066
      %v1075 = vadd.f32 %v1002, %v1067
      %v1076 = vadd.f32 %v1003, %v1068
      %v1077 = vld [vmem:[%s5] sm:$0xff]
      %v1078 = vld [vmem:[%s5 + $0x8] sm:$0xff]
      %v1079 = vld [vmem:[%s5 + $0x10] sm:$0xff]
      %v1080 = vld [vmem:[%s5 + $0x18] sm:$0xff]
      %1082 = vset.pattern.permute.xlu0 0
      %1083 = vperm.xlu0 %1082, %v1077
      %v1084 = vpop.permute.xlu0 %1083
      %1087 = vset.pattern.permute.xlu0 0
      %1088 = vperm.xlu0 %1087, %v1078
      %v1089 = vpop.permute.xlu0 %1088
      %1092 = vset.pattern.permute.xlu0 0
      %1093 = vperm.xlu0 %1092, %v1079
      %v1094 = vpop.permute.xlu0 %1093
      %1097 = vset.pattern.permute.xlu0 0
      %1098 = vperm.xlu0 %1097, %v1080
      %v1099 = vpop.permute.xlu0 %1098
      %v1101 = vadd.f32 %v1069, %v1084
      %v1102 = vadd.f32 %v1070, %v1084
      %v1103 = vadd.f32 %v1071, %v1089
      %v1104 = vadd.f32 %v1072, %v1089
      %v1105 = vadd.f32 %v1073, %v1094
      %v1106 = vadd.f32 %v1074, %v1094
      %v1107 = vadd.f32 %v1075, %v1099
      %v1108 = vadd.f32 %v1076, %v1099
      %v1109 = vmul.f32 %v1101, 0.5
      %v1110 = vmul.f32 %v1102, 0.5
      %v1111 = vmul.f32 %v1103, 0.5
      %v1112 = vmul.f32 %v1104, 0.5
      %v1113 = vmul.f32 %v1105, 0.5
      %v1114 = vmul.f32 %v1106, 0.5
      %v1115 = vmul.f32 %v1107, 0.5
      %v1116 = vmul.f32 %v1108, 0.5
      %v1117 = vmul.f32 %v1101, 0.70710677
      %v1118 = vmul.f32 %v1102, 0.70710677
      %v1119 = vmul.f32 %v1103, 0.70710677
      %v1120 = vmul.f32 %v1104, 0.70710677
      %v1121 = vmul.f32 %v1105, 0.70710677
      %v1122 = vmul.f32 %v1106, 0.70710677
      %v1123 = vmul.f32 %v1107, 0.70710677
      %v1124 = vmul.f32 %v1108, 0.70710677
      %vm1125 = vcmp.ge.f32.partialorder %v1117, 0.0
      %vm1126 = vcmp.ge.f32.partialorder %v1118, 0.0
      %vm1127 = vcmp.ge.f32.partialorder %v1119, 0.0
      %vm1128 = vcmp.ge.f32.partialorder %v1120, 0.0
      %vm1129 = vcmp.ge.f32.partialorder %v1121, 0.0
      %vm1130 = vcmp.ge.f32.partialorder %v1122, 0.0
      %vm1131 = vcmp.ge.f32.partialorder %v1123, 0.0
      %vm1132 = vcmp.ge.f32.partialorder %v1124, 0.0
      %v1133 = vsel %vm1125, 1.0, -1.0
      %v1134 = vsel %vm1126, 1.0, -1.0
      %v1135 = vsel %vm1127, 1.0, -1.0
      %v1136 = vsel %vm1128, 1.0, -1.0
      %v1137 = vsel %vm1129, 1.0, -1.0
      %v1138 = vsel %vm1130, 1.0, -1.0
      %v1139 = vsel %vm1131, 1.0, -1.0
      %v1140 = vsel %vm1132, 1.0, -1.0
      %v1141 = vand.u32 2147483647, %v1117
      %v1142 = vand.u32 2147483647, %v1118
      %v1143 = vand.u32 2147483647, %v1119
      %v1144 = vand.u32 2147483647, %v1120
      %v1145 = vand.u32 2147483647, %v1121
      %v1146 = vand.u32 2147483647, %v1122
      %v1147 = vand.u32 2147483647, %v1123
      %v1148 = vand.u32 2147483647, %v1124
      %v1149 = vmul.f32 %v1141, 0.3275911
      %v1150 = vmul.f32 %v1142, 0.3275911
      %v1151 = vmul.f32 %v1143, 0.3275911
      %v1152 = vmul.f32 %v1144, 0.3275911
      %v1153 = vmul.f32 %v1145, 0.3275911
      %v1154 = vmul.f32 %v1146, 0.3275911
      %v1155 = vmul.f32 %v1147, 0.3275911
      %v1156 = vmul.f32 %v1148, 0.3275911
      %v1157 = vadd.f32 %v1149, 1.0
      %v1158 = vadd.f32 %v1150, 1.0
      %v1159 = vadd.f32 %v1151, 1.0
      %v1160 = vadd.f32 %v1152, 1.0
      %v1161 = vadd.f32 %v1153, 1.0
      %v1162 = vadd.f32 %v1154, 1.0
      %v1163 = vadd.f32 %v1155, 1.0
      %v1164 = vadd.f32 %v1156, 1.0
      %v1165 = vrcp.pop %v1157
      %v1166 = vmul.f32 1.0, %v1165
      %v1167 = vrcp.pop %v1158
      %v1168 = vmul.f32 1.0, %v1167
      %v1169 = vrcp.pop %v1159
      %v1170 = vmul.f32 1.0, %v1169
      %v1171 = vrcp.pop %v1160
      %v1172 = vmul.f32 1.0, %v1171
      %v1173 = vrcp.pop %v1161
      %v1174 = vmul.f32 1.0, %v1173
      %v1175 = vrcp.pop %v1162
      %v1176 = vmul.f32 1.0, %v1175
      %v1177 = vrcp.pop %v1163
      %v1178 = vmul.f32 1.0, %v1177
      %v1179 = vrcp.pop %v1164
      %v1180 = vmul.f32 1.0, %v1179
      %v1181 = vmul.f32 %v1166, 1.0614054
      %v1182 = vmul.f32 %v1168, 1.0614054
      %v1183 = vmul.f32 %v1170, 1.0614054
      %v1184 = vmul.f32 %v1172, 1.0614054
      %v1185 = vmul.f32 %v1174, 1.0614054
      %v1186 = vmul.f32 %v1176, 1.0614054
      %v1187 = vmul.f32 %v1178, 1.0614054
      %v1188 = vmul.f32 %v1180, 1.0614054
      %v1189 = vadd.f32 %v1181, -1.4531521
      %v1190 = vadd.f32 %v1182, -1.4531521
      %v1191 = vadd.f32 %v1183, -1.4531521
      %v1192 = vadd.f32 %v1184, -1.4531521
      %v1193 = vadd.f32 %v1185, -1.4531521
      %v1194 = vadd.f32 %v1186, -1.4531521
      %v1195 = vadd.f32 %v1187, -1.4531521
      %v1196 = vadd.f32 %v1188, -1.4531521
      %v1197 = vmul.f32 %v1189, %v1166
      %v1198 = vmul.f32 %v1190, %v1168
      %v1199 = vmul.f32 %v1191, %v1170
      %v1200 = vmul.f32 %v1192, %v1172
      %v1201 = vmul.f32 %v1193, %v1174
      %v1202 = vmul.f32 %v1194, %v1176
      %v1203 = vmul.f32 %v1195, %v1178
      %v1204 = vmul.f32 %v1196, %v1180
      %v1205 = vadd.f32 %v1197, 1.4214138
      %v1206 = vadd.f32 %v1198, 1.4214138
      %v1207 = vadd.f32 %v1199, 1.4214138
      %v1208 = vadd.f32 %v1200, 1.4214138
      %v1209 = vadd.f32 %v1201, 1.4214138
      %v1210 = vadd.f32 %v1202, 1.4214138
      %v1211 = vadd.f32 %v1203, 1.4214138
      %v1212 = vadd.f32 %v1204, 1.4214138
      %v1213 = vmul.f32 %v1205, %v1166
      %v1214 = vmul.f32 %v1206, %v1168
      %v1215 = vmul.f32 %v1207, %v1170
      %v1216 = vmul.f32 %v1208, %v1172
      %v1217 = vmul.f32 %v1209, %v1174
      %v1218 = vmul.f32 %v1210, %v1176
      %v1219 = vmul.f32 %v1211, %v1178
      %v1220 = vmul.f32 %v1212, %v1180
      %v1221 = vadd.f32 %v1213, -0.28449672
      %v1222 = vadd.f32 %v1214, -0.28449672
      %v1223 = vadd.f32 %v1215, -0.28449672
      %v1224 = vadd.f32 %v1216, -0.28449672
      %v1225 = vadd.f32 %v1217, -0.28449672
      %v1226 = vadd.f32 %v1218, -0.28449672
      %v1227 = vadd.f32 %v1219, -0.28449672
      %v1228 = vadd.f32 %v1220, -0.28449672
      %v1229 = vmul.f32 %v1221, %v1166
      %v1230 = vmul.f32 %v1222, %v1168
      %v1231 = vmul.f32 %v1223, %v1170
      %v1232 = vmul.f32 %v1224, %v1172
      %v1233 = vmul.f32 %v1225, %v1174
      %v1234 = vmul.f32 %v1226, %v1176
      %v1235 = vmul.f32 %v1227, %v1178
      %v1236 = vmul.f32 %v1228, %v1180
      %v1237 = vadd.f32 %v1229, 0.2548296
      %v1238 = vadd.f32 %v1230, 0.2548296
      %v1239 = vadd.f32 %v1231, 0.2548296
      %v1240 = vadd.f32 %v1232, 0.2548296
      %v1241 = vadd.f32 %v1233, 0.2548296
      %v1242 = vadd.f32 %v1234, 0.2548296
      %v1243 = vadd.f32 %v1235, 0.2548296
      %v1244 = vadd.f32 %v1236, 0.2548296
      %v1245 = vmul.f32 %v1237, %v1166
      %v1246 = vmul.f32 %v1238, %v1168
      %v1247 = vmul.f32 %v1239, %v1170
      %v1248 = vmul.f32 %v1240, %v1172
      %v1249 = vmul.f32 %v1241, %v1174
      %v1250 = vmul.f32 %v1242, %v1176
      %v1251 = vmul.f32 %v1243, %v1178
      %v1252 = vmul.f32 %v1244, %v1180
      %v1253 = vmul.f32 %v1141, %v1141
      %v1254 = vmul.f32 %v1142, %v1142
      %v1255 = vmul.f32 %v1143, %v1143
      %v1256 = vmul.f32 %v1144, %v1144
      %v1257 = vmul.f32 %v1145, %v1145
      %v1258 = vmul.f32 %v1146, %v1146
      %v1259 = vmul.f32 %v1147, %v1147
      %v1260 = vmul.f32 %v1148, %v1148
      %v1261 = vsub.f32 0.0, %v1253
      %v1262 = vsub.f32 0.0, %v1254
      %v1263 = vsub.f32 0.0, %v1255
      %v1264 = vsub.f32 0.0, %v1256
      %v1265 = vsub.f32 0.0, %v1257
      %v1266 = vsub.f32 0.0, %v1258
      %v1267 = vsub.f32 0.0, %v1259
      %v1268 = vsub.f32 0.0, %v1260
      %v1269 = vmul.f32 %v1261, 1.442695
      %v1270 = vpow.pop %v1269
      %v1271 = vmul.f32 %v1262, 1.442695
      %v1272 = vpow.pop %v1271
      %v1273 = vmul.f32 %v1263, 1.442695
      %v1274 = vpow.pop %v1273
      %v1275 = vmul.f32 %v1264, 1.442695
      %v1276 = vpow.pop %v1275
      %v1277 = vmul.f32 %v1265, 1.442695
      %v1278 = vpow.pop %v1277
      %v1279 = vmul.f32 %v1266, 1.442695
      %v1280 = vpow.pop %v1279
      %v1281 = vmul.f32 %v1267, 1.442695
      %v1282 = vpow.pop %v1281
      %v1283 = vmul.f32 %v1268, 1.442695
      %v1284 = vpow.pop %v1283
      %v1285 = vmul.f32 %v1245, %v1270
      %v1286 = vmul.f32 %v1246, %v1272
      %v1287 = vmul.f32 %v1247, %v1274
      %v1288 = vmul.f32 %v1248, %v1276
      %v1289 = vmul.f32 %v1249, %v1278
      %v1290 = vmul.f32 %v1250, %v1280
      %v1291 = vmul.f32 %v1251, %v1282
      %v1292 = vmul.f32 %v1252, %v1284
      %v1293 = vsub.f32 1.0, %v1285
      %v1294 = vsub.f32 1.0, %v1286
      %v1295 = vsub.f32 1.0, %v1287
      %v1296 = vsub.f32 1.0, %v1288
      %v1297 = vsub.f32 1.0, %v1289
      %v1298 = vsub.f32 1.0, %v1290
      %v1299 = vsub.f32 1.0, %v1291
      %v1300 = vsub.f32 1.0, %v1292
      %v1301 = vmul.f32 %v1133, %v1293
      %v1302 = vmul.f32 %v1134, %v1294
      %v1303 = vmul.f32 %v1135, %v1295
      %v1304 = vmul.f32 %v1136, %v1296
      %v1305 = vmul.f32 %v1137, %v1297
      %v1306 = vmul.f32 %v1138, %v1298
      %v1307 = vmul.f32 %v1139, %v1299
      %v1308 = vmul.f32 %v1140, %v1300
      %v1309 = vadd.f32 %v1301, 1.0
      %v1310 = vadd.f32 %v1302, 1.0
      %v1311 = vadd.f32 %v1303, 1.0
      %v1312 = vadd.f32 %v1304, 1.0
      %v1313 = vadd.f32 %v1305, 1.0
      %v1314 = vadd.f32 %v1306, 1.0
      %v1315 = vadd.f32 %v1307, 1.0
      %v1316 = vadd.f32 %v1308, 1.0
      %v1317 = vmul.f32 %v1109, %v1309
      %v1318 = vmul.f32 %v1110, %v1310
      %v1319 = vmul.f32 %v1111, %v1311
      %v1320 = vmul.f32 %v1112, %v1312
      %v1321 = vmul.f32 %v1113, %v1313
      %v1322 = vmul.f32 %v1114, %v1314
      %v1323 = vmul.f32 %v1115, %v1315
      %v1324 = vmul.f32 %v1116, %v1316
      %v1325 = vld [vmem:[%s6] sm:$0xf]
      %v1326 = vld [vmem:[%s7] sm:$0xf]
      %1328 = vset.pattern.permute.xlu0 0
      %1329 = vperm.xlu0 %1328, %v1326
      %v1330 = vpop.permute.xlu0 %1329
      %vm1332 = vcmask 261120
      %v1334 = vsel %vm1332, %v1325, 0
      %1336 = vmatprep.subr.mxu0 0.0
      %1337 = vmatpush1.msra.mxu0 0.0
      %1338 = vmatprep.subr.mxu0 0.0
      %1339 = vmatpush1.msra.mxu0 0.0
      %1340 = vmatprep.subr.mxu0 0.0
      %1341 = vmatpush1.msra.mxu0 0.0
      %1342 = vmatprep.subr.mxu0 0.0
      %1343 = vmatpush1.msra.mxu0 0.0
      %1344 = vmatprep.subr.mxu0 0.0
      %1345 = vmatpush1.msra.mxu0 0.0
      %1346 = vmatprep.subr.mxu0 0.0
      %1347 = vmatpush1.msra.mxu0 0.0
      %1348 = vmatprep.subr.mxu0 0.0
      %1349 = vmatpush1.msra.mxu0 0.0
      %1350 = vmatprep.subr.mxu0 0.0
      %1351 = vmatpush1.msra.mxu0 0.0
      %1352 = vmatprep.subr.mxu0 0.0
      %1353 = vmatpush1.msra.mxu0 0.0
      %1354 = vmatprep.subr.mxu0 0.0
      %1355 = vmatpush1.msra.mxu0 0.0
      %1356 = vmatprep.subr.mxu0 0.0
      %1357 = vmatpush1.msra.mxu0 0.0
      %1358 = vmatprep.subr.mxu0 0.0
      %1359 = vmatpush1.msra.mxu0 0.0
      %1360 = vmatprep.subr.mxu0 %v1324
      %1361 = vmatpush1.msra.mxu0 %v1323
      %1362 = vmatprep.subr.mxu0 %v1322
      %1363 = vmatpush1.msra.mxu0 %v1321
      %1364 = vmatprep.subr.mxu0 %v1320
      %1365 = vmatpush1.msra.mxu0 %v1319
      %1366 = vmatprep.subr.mxu0 %v1318
      %1367 = vmatpush1.msra.mxu0 %v1317
      %1368 = vmatprep.subr.mxu0 0.0
      %1369 = vmatpush2.msra.mxu0 0.0
      %1370 = vmatprep.subr.mxu0 0.0
      %1371 = vmatpush2.msra.mxu0 0.0
      %1372 = vmatprep.subr.mxu0 0.0
      %1373 = vmatpush2.msra.mxu0 0.0
      %1374 = vmatprep.subr.mxu0 0.0
      %1375 = vmatpush2.msra.mxu0 0.0
      %1376 = vmatprep.subr.mxu0 0.0
      %1377 = vmatpush2.msra.mxu0 0.0
      %1378 = vmatprep.subr.mxu0 0.0
      %1379 = vmatpush2.msra.mxu0 0.0
      %1380 = vmatprep.subr.mxu0 0.0
      %1381 = vmatpush2.msra.mxu0 0.0
      %1382 = vmatprep.subr.mxu0 0.0
      %1383 = vmatpush2.msra.mxu0 0.0
      %1384 = vmatprep.subr.mxu0 0.0
      %1385 = vmatpush2.msra.mxu0 0.0
      %1386 = vmatprep.subr.mxu0 0.0
      %1387 = vmatpush2.msra.mxu0 0.0
      %1388 = vmatprep.subr.mxu0 0.0
      %1389 = vmatpush2.msra.mxu0 0.0
      %1390 = vmatprep.subr.mxu0 0.0
      %1391 = vmatpush2.msra.mxu0 0.0
      %1392 = vmatprep.subr.mxu0 0.0
      %1393 = vmatpush2.msra.mxu0 0.0
      %1394 = vmatprep.subr.mxu0 0.0
      %1395 = vmatpush2.msra.mxu0 0.0
      %1396 = vmatprep.subr.mxu0 0.0
      %1397 = vmatpush2.msra.mxu0 0.0
      %1398 = vmatprep.subr.mxu0 0.0
      %1399 = vmatpush2.msra.mxu0 0.0
      %1400 = vmatprep.mubr.f32.mxu0 0.0
      %1401 = vmatmul.mubr.f32.gmra.mxu0 %v1334
      %v1402 = vpop.f32.mrf.mxu0
      %v1403 = vadd.f32 %v1330, %v1402
      %v1404 = vpop.f32.mrf.mxu0
      %v1405 = vadd.f32 %v1330, %v1404
      %1406 = vdwg.mxu0
      %v1409 = vcombine.low %v1403, %v1405
      %1411 = vst [vmem:[%s307] sm:$0xff] %v1409
      %s1412 = smul.u32 2, %s19
      %p1413 = scmp.lt.s32.totalorder %s1412, 3
      %s1414 = scalar_select %p1413, %s1412, 3
      %s1415 = smul.addr %s1414, 4
      %s1416 = scalar_lea.vmem %s8, %s1415
      // Predicated region
      $region53: #{mlp_pallas.1} parent=51 // pred_check
        %p1417 = pneg %p210
      $region54: #{mlp_pallas.1} parent=51 // pred_check_branch
        %1419 = sbr.rel (%p1417) target = $region56
      $region55: #{mlp_pallas.1} parent=51 // pred_region
        %s1420 = smul.u32 2, %s19
      $region56: #{mlp_pallas.1} parent=51 // pred_fallthru
        _
    $region52: #{mlp_pallas.1} parent=5 // pred_fallthru
      _
    %p1421 = scmp.le.s32.totalorder 2, %s14
    // Predicated region
    $region57: #{mlp_pallas.1} parent=5 // pred_check
      %p1422 = pneg %p1421
    $region58: #{mlp_pallas.1} parent=5 // pred_check_branch
      %1424 = sbr.rel (%p1422) target = $region60
    $region59: #{mlp_pallas.1} parent=5 // pred_region
      %s1425 = ssub.s32 %s14, 2
      // Predicated region
      $region61: #{mlp_pallas.1} parent=59 // pred_check
        %p1426 = pneg %p216
      $region62: #{mlp_pallas.1} parent=59 // pred_check_branch
        %1428 = sbr.rel (%p1426) target = $region64
      $region63: #{mlp_pallas.1} parent=59 // pred_region
        %s1429 = smul.u32 2, %s20
        %p1430 = scmp.lt.s32.totalorder %s1429, 3
        %s1431 = scalar_select %p1430, %s1429, 3
        %s1432 = smul.addr %s1431, 4
        %s1433 = scalar_lea.vmem %s8, %s1432
      $region64: #{mlp_pallas.1} parent=59 // pred_fallthru
        _
    $region60: #{mlp_pallas.1} parent=5 // pred_fallthru
      _
  $region6: #{mlp_pallas.1} parent=0 // loop_footer
    %s18 = sadd.s32 1, %s14
  $region7: #{mlp_pallas.1} parent=0 // loop_footer_branch
    %13 = sbr.rel target = $region3
  $region8: #{mlp_pallas.1} parent=0 // loop_exit
    _

</llo_original>
